<compile_context>
chip_gen: v5e
topology: v5e:2x2
jax: 0.10.0
libtpu: 0.0.40
codegen_flags: <defaults>
</compile_context>

<pallas_src>
import functools

import jax
import jax.numpy as jnp
from jax import lax
from jax.experimental import pallas as pl
from jax.experimental.pallas import tpu as pltpu


def _round_up(x, m):
    return (x + m - 1) // m * m


def _vmem_capacity_bytes():
    """Physical VMEM per TensorCore; conservative (v7x-sized) fallback."""
    try:
        info = pltpu.get_tpu_info()
        for attr in ("vmem_capacity_bytes", "vmem_bytes", "vmem_size_bytes"):
            v = getattr(info, attr, None)
            if v:
                return int(v)
    except Exception:
        pass
    return 64 << 20


# ----------------------------------------------------------------------------
# Kernel 1: Timesteps (sinusoidal) + TimestepEmbedding (Linear -> SiLU -> Linear)
# ----------------------------------------------------------------------------
def _time_embed_kernel(scale, t_ref, freqs2_ref, w1_ref, b1_ref, w2_ref, b2_ref,
                       out_ref):
    # t_ref:      (B, 1)  f32 timesteps
    # freqs2_ref: (1, F)  f32 duplicated frequency table [freqs | freqs]
    F = freqs2_ref.shape[-1]
    half = F // 2
    emb = (scale * t_ref[...]) * freqs2_ref[...]                       # (B, F)
    # flip_sin_to_cos=True, downscale_freq_shift=0.0  ->  [cos | sin]
    col = lax.broadcasted_iota(jnp.int32, emb.shape, 1)
    proj = jnp.where(col < half, jnp.cos(emb), jnp.sin(emb))           # (B, F)
    proj = proj.astype(w1_ref.dtype)                                   # .to(dtype)

    h = jnp.dot(proj, w1_ref[...],
                preferred_element_type=jnp.float32) + b1_ref[...]      # (B, T) f32
    h = h * jax.nn.sigmoid(h)                                          # SiLU (f32)
    h = h.astype(w2_ref.dtype)
    out = jnp.dot(h, w2_ref[...],
                  preferred_element_type=jnp.float32) + b2_ref[...]    # (B, T) f32
    out_ref[...] = out.astype(out_ref.dtype)


# ----------------------------------------------------------------------------
# Kernel 2a: RMSNorm(D) over rows, output in the matmul-input dtype (bf16)
# ----------------------------------------------------------------------------
def _rmsnorm_kernel(eps, x_ref, g_ref, out_ref):
    # x_ref: (tmn, D), g_ref: (1, D) f32, out_ref: (tmn, D) bf16
    x = x_ref[...].astype(jnp.float32)
    ms = jnp.mean(x * x, axis=-1, keepdims=True)
    xn = x * lax.rsqrt(ms + eps) * g_ref[...]
    out_ref[...] = xn.astype(out_ref.dtype)


# ----------------------------------------------------------------------------
# Kernel 2b: pure matmul + bias  (normalized x already in bf16)
# ----------------------------------------------------------------------------
def _caption_matmul_kernel(xn_ref, w_ref, b_ref, out_ref):
    # xn_ref: (tm, D) bf16, w_ref: (D, tn) bf16, b_ref: (1, tn) f32
    out = jnp.dot(xn_ref[...], w_ref[...],
                  preferred_element_type=jnp.float32) + b_ref[...]     # (tm, tn) f32
    out_ref[...] = out.astype(out_ref.dtype)


# ----------------------------------------------------------------------------
# Wrapper (tile/loop-order decisions, pallas_call plumbing)
# ----------------------------------------------------------------------------
def _pick_col_tile(H):
    for tn in (1024, 512, 256, 128):
        if H % tn == 0:
            return tn
    # Small / irregular H: one full-width column block.
    # TODO(synk): for irregular H forcing narrow tiles, pre-tile cap_w to a
    # contiguous (gj, D, tn) layout for fully contiguous weight DMAs.
    return H


def lumina2_combined_timestep_caption_embedding(
        timestep, text_hidden_states, params, *,
        dtype=jnp.float32, timestep_scale=1.0, norm_eps=1e-5):
    B = timestep.shape[0]
    Bt, S, D = text_hidden_states.shape
    T = params["w2"].shape[-1]          # time_embed_dim = min(hidden, 1024)
    H = params["cap_w"].shape[-1]       # hidden_size

    # ---- 1) time embedding (single block; µs-scale, DMA-bound -> keep simple)
    time_embed = pl.pallas_call(
        functools.partial(_time_embed_kernel, float(timestep_scale)),
        out_shape=jax.ShapeDtypeStruct((B, T), dtype),
        in_specs=[pl.BlockSpec(memory_space=pltpu.MemorySpace.VMEM)] * 6,
        out_specs=pl.BlockSpec(memory_space=pltpu.MemorySpace.VMEM),
    )(timestep.reshape(B, 1).astype(jnp.float32),
      params["freqs2"], params["w1"], params["b1"], params["w2"], params["b2"])

    # ---- 2) caption embedding ----
    M = Bt * S
    x2d = text_hidden_states.reshape(M, D)
    out_dt = text_hidden_states.dtype
    w_dt = params["cap_w"].dtype
    xn_dt = w_dt                        # normalized x stored in MXU input dtype

    vmem_cap = _vmem_capacity_bytes()
    small_vmem = vmem_cap < (96 << 20)          # v7x (64 MiB) vs v5e/v6e (128 MiB)
    vmem_budget = int(vmem_cap * 0.70)

    # 2a) RMSNorm once per row (hoisted out of the column-tile loop).
    tmn = M if M <= 256 else 256
    xn = pl.pallas_call(
        functools.partial(_rmsnorm_kernel, float(norm_eps)),
        out_shape=jax.ShapeDtypeStruct((M, D), xn_dt),
        grid=(pl.cdiv(M, tmn),),
        in_specs=[pl.BlockSpec((tmn, D), lambda i: (i, 0)),
                  pl.BlockSpec((1, D), lambda i: (0, 0))],
        out_specs=pl.BlockSpec((tmn, D), lambda i: (i, 0)),
        compiler_params=pltpu.CompilerParams(
            dimension_semantics=("parallel",)),
    )(x2d, params["cap_g"].reshape(1, D).astype(jnp.float32))

    # 2b) tiled matmul + bias.  Generation-aware tile sizes.
    isz = lambda dt: jnp.dtype(dt).itemsize
    tn = _pick_col_tile(H)
    tm = 512 if small_vmem else 1024
    if M <= tm:
        tm = M                                    # full-extent row block
    else:
        def _blk_bytes(_tm):
            per = (_tm * D * isz(xn_dt) + D * tn * isz(w_dt)
                   + tn * 4 + _tm * tn * isz(out_dt))
            return 2 * per + _tm * tn * 4         # double-buffer + f32 temp
        while tm > 128 and _blk_bytes(tm) > vmem_budget:
            tm //= 2
    gi, gj = pl.cdiv(M, tm), pl.cdiv(H, tn)

    per_blk = (tm * D * isz(xn_dt) + D * tn * isz(w_dt)
               + tn * 4 + tm * tn * isz(out_dt))
    est = 2 * per_blk + tm * tn * 4
    vmem_limit = int(min(max(est + (4 << 20), 32 << 20),
                         (48 << 20) if small_vmem else (100 << 20)))

    # Loop order: rows-outer keeps xn resident per row tile (cap_w streamed gi
    # times); cols-outer keeps cap_w resident (xn streamed gj times).  Pick the
    # cheaper; with a single row tile lead with columns so megacore splits the
    # weight columns rather than re-streaming W per core.
    x_bytes = M * D * isz(xn_dt)
    w_bytes = D * H * isz(w_dt)
    rows_outer = (gi * w_bytes + x_bytes) <= (gj * x_bytes + w_bytes)
    if gi == 1:
        rows_outer = False
    if gj == 1:
        rows_outer = True

    if rows_outer:
        grid = (gi, gj)
        xn_spec = pl.BlockSpec((tm, D), lambda i, j: (i, 0))
        w_spec = pl.BlockSpec((D, tn), lambda i, j: (0, j))
        b_spec = pl.BlockSpec((1, tn), lambda i, j: (0, j))
        o_spec = pl.BlockSpec((tm, tn), lambda i, j: (i, j))
    else:
        grid = (gj, gi)
        xn_spec = pl.BlockSpec((tm, D), lambda j, i: (i, 0))
        w_spec = pl.BlockSpec((D, tn), lambda j, i: (0, j))
        b_spec = pl.BlockSpec((1, tn), lambda j, i: (0, j))
        o_spec = pl.BlockSpec((tm, tn), lambda j, i: (i, j))

    caption = pl.pallas_call(
        _caption_matmul_kernel,
        out_shape=jax.ShapeDtypeStruct((M, H), out_dt),
        grid=grid,
        in_specs=[xn_spec, w_spec, b_spec],
        out_specs=o_spec,
        compiler_params=pltpu.CompilerParams(
            dimension_semantics=("parallel", "parallel"),
            vmem_limit_bytes=vmem_limit),
    )(xn, params["cap_w"], params["cap_b"].reshape(1, H))

    caption = caption.reshape(Bt, S, H)
    return time_embed, caption


# ----------------------------------------------------------------------------
# Deterministic parameter construction (matches shapes in __init__)
# ----------------------------------------------------------------------------
def make_params(key, *, hidden_size=4096, text_feat_dim=2048,
                frequency_embedding_size=256, max_period=10000.0,
                weight_dtype=jnp.bfloat16):
    time_embed_dim = min(hidden_size, 1024)
    half = frequency_embedding_size // 2

    # Timesteps frequency table (downscale_freq_shift = 0.0), duplicated so the
    # kernel avoids a lane-axis concatenate.
    exponent = (-jnp.log(jnp.float32(max_period))
                * jnp.arange(half, dtype=jnp.float32) / jnp.float32(half))
    freqs = jnp.exp(exponent)
    freqs2 = jnp.concatenate([freqs, freqs]).reshape(1, frequency_embedding_size)

    k1, k2, k3, k4, k5 = jax.random.split(key, 5)
    # TimestepEmbedding: Linear(F, T) -> SiLU -> Linear(T, T); weights bf16,
    # biases f32 (added after the f32 accumulation).
    w1 = (jax.random.normal(k1, (frequency_embedding_size, time_embed_dim),
                            jnp.float32) * 0.02).astype(weight_dtype)
    b1 = jax.random.normal(k2, (1, time_embed_dim), jnp.float32) * 0.02
    w2 = (jax.random.normal(k3, (time_embed_dim, time_embed_dim),
                            jnp.float32) * 0.02).astype(weight_dtype)
    b2 = jax.random.normal(k4, (1, time_embed_dim), jnp.float32) * 0.02

    # caption_embedder: RMSNorm weight = ones; Linear trunc_normal(0.02), bias=0
    cap_g = jnp.ones((text_feat_dim,), jnp.float32)
    cap_w = (jax.random.truncated_normal(k5, -2.0, 2.0,
                                         (text_feat_dim, hidden_size),
                                         jnp.float32) * 0.02).astype(weight_dtype)
    cap_b = jnp.zeros((hidden_size,), jnp.float32)

    return dict(freqs2=freqs2, w1=w1, b1=b1, w2=w2, b2=b2,
                cap_g=cap_g, cap_w=cap_w, cap_b=cap_b)


# ----------------------------------------------------------------------------
# Pure-JAX reference (same bf16 weights / f32 accumulation) for a sanity check
# ----------------------------------------------------------------------------
def _reference(timestep, text, params, dtype, scale, eps):
    F = params["freqs2"].shape[-1]
    half = F // 2
    freqs = params["freqs2"][0, :half]
    emb = scale * timestep[:, None].astype(jnp.float32) * freqs[None, :]
    proj = jnp.concatenate([jnp.cos(emb), jnp.sin(emb)], axis=-1)
    proj = proj.astype(params["w1"].dtype)
    h = jnp.dot(proj, params["w1"], preferred_element_type=jnp.float32) + params["b1"]
    h = h * jax.nn.sigmoid(h)
    te = jnp.dot(h.astype(params["w2"].dtype), params["w2"],
                 preferred_element_type=jnp.float32) + params["b2"]
    te = te.astype(dtype)

    x = text.astype(jnp.float32)
    ms = jnp.mean(x * x, axis=-1, keepdims=True)
    xn = x * lax.rsqrt(ms + eps) * params["cap_g"].astype(jnp.float32)
    cap = jnp.dot(xn.astype(params["cap_w"].dtype), params["cap_w"],
                  preferred_element_type=jnp.float32) + params["cap_b"]
    return te, cap.astype(text.dtype)


if __name__ == "__main__":
    # Small but tiling-exercising config: M = 1200 rows (ragged last row tile,
    # multi-row-tile grid), H = 384 (column grid of 3 with tn = 128),
    # bf16 weights with f32 accumulation.
    hidden_size = 384
    text_feat_dim = 384
    frequency_embedding_size = 256
    B, S = 2, 600

    key = jax.random.PRNGKey(0)
    kp, kt, kx = jax.random.split(key, 3)

    params = make_params(kp, hidden_size=hidden_size,
                         text_feat_dim=text_feat_dim,
                         frequency_embedding_size=frequency_embedding_size)

    timestep = jax.random.uniform(kt, (B,), jnp.float32) * 1000.0
    text_hidden_states = jax.random.normal(kx, (B, S, text_feat_dim), jnp.float32)

    time_embed, caption_embed = lumina2_combined_timestep_caption_embedding(
        timestep, text_hidden_states, params,
        dtype=jnp.float32, timestep_scale=1.0, norm_eps=1e-5)
    jax.block_until_ready((time_embed, caption_embed))

    assert time_embed.shape == (B, min(hidden_size, 1024))
    assert caption_embed.shape == (B, S, hidden_size)

    ref_te, ref_cap = _reference(timestep, text_hidden_states, params,
                                 jnp.float32, 1.0, 1e-5)
    assert bool(jnp.all(jnp.isfinite(time_embed)))
    assert bool(jnp.all(jnp.isfinite(caption_embed)))
    # Caption path: identical math (bf16 weights, f32 accumulation) -> tight.
    assert bool(jnp.allclose(caption_embed, ref_cap, atol=2e-2, rtol=2e-2))
    # Time path: loose tolerance to absorb sin/cos approximation differences.
    assert bool(jnp.allclose(time_embed, ref_te, atol=1e-1, rtol=1e-1))

    print("KERNEL_OK")
</pallas_src>

<mosaic_0001>
module attributes {stable_mosaic.version = 11 : i64} {
  func.func @_time_embed_kernel(%arg0: memref<2x1xf32, #tpu.memory_space<vmem>>, %arg1: memref<1x256xf32, #tpu.memory_space<vmem>>, %arg2: memref<256x384xbf16, #tpu.memory_space<vmem>>, %arg3: memref<1x384xf32, #tpu.memory_space<vmem>>, %arg4: memref<384x384xbf16, #tpu.memory_space<vmem>>, %arg5: memref<1x384xf32, #tpu.memory_space<vmem>>, %arg6: memref<2x384xf32, #tpu.memory_space<vmem>>) attributes {dimension_semantics = [], scalar_prefetch = 0 : i64, scratch_operands = 0 : i64, tpu.core_type = #tpu.core_type<tc>} {
    %c0 = arith.constant 0 : index
    %c0_0 = arith.constant 0 : index
    %0 = vector.load %arg0[%c0, %c0_0] : memref<2x1xf32, #tpu.memory_space<vmem>>, vector<2x1xf32>
    %cst = arith.constant 1.000000e+00 : f32
    %1 = vector.broadcast %cst : f32 to vector<2x1xf32>
    %2 = arith.mulf %1, %0 : vector<2x1xf32>
    %c0_1 = arith.constant 0 : index
    %c0_2 = arith.constant 0 : index
    %3 = vector.load %arg1[%c0_1, %c0_2] : memref<1x256xf32, #tpu.memory_space<vmem>>, vector<1x256xf32>
    %4 = vector.broadcast %2 : vector<2x1xf32> to vector<2x256xf32>
    %5 = vector.broadcast %3 : vector<1x256xf32> to vector<2x256xf32>
    %6 = arith.mulf %4, %5 : vector<2x256xf32>
    %7 = tpu.iota {dimensions = array<i32: 1>} : vector<2x256xi32>
    %c128_i32 = arith.constant 128 : i32
    %8 = vector.broadcast %c128_i32 : i32 to vector<2x256xi32>
    %9 = arith.cmpi slt, %7, %8 : vector<2x256xi32>
    %10 = math.cos %6 : vector<2x256xf32>
    %11 = math.sin %6 : vector<2x256xf32>
    %12 = arith.select %9, %10, %11 : vector<2x256xi1>, vector<2x256xf32>
    %13 = arith.truncf %12 : vector<2x256xf32> to vector<2x256xbf16>
    %c0_3 = arith.constant 0 : index
    %c0_4 = arith.constant 0 : index
    %14 = vector.load %arg2[%c0_3, %c0_4] : memref<256x384xbf16, #tpu.memory_space<vmem>>, vector<256x384xbf16>
    %cst_5 = arith.constant dense<0.000000e+00> : vector<2x384xf32>
    %15 = tpu.matmul %13, %14, %cst_5 {dimension_numbers = #tpu.dot_dimension_numbers<[1], [0], [0], [1], [0, 0, 1, 1], [], []>} : vector<2x256xbf16>, vector<256x384xbf16>, vector<2x384xf32> -> vector<2x384xf32>
    %c0_6 = arith.constant 0 : index
    %c0_7 = arith.constant 0 : index
    %16 = vector.load %arg3[%c0_6, %c0_7] : memref<1x384xf32, #tpu.memory_space<vmem>>, vector<1x384xf32>
    %17 = vector.broadcast %16 : vector<1x384xf32> to vector<2x384xf32>
    %18 = arith.addf %15, %17 : vector<2x384xf32>
    %19 = arith.negf %18 : vector<2x384xf32>
    %20 = math.exp %19 : vector<2x384xf32>
    %cst_8 = arith.constant 1.000000e+00 : f32
    %21 = vector.broadcast %cst_8 : f32 to vector<2x384xf32>
    %22 = arith.addf %21, %20 : vector<2x384xf32>
    %23 = arith.divf %21, %22 : vector<2x384xf32>
    %24 = arith.mulf %18, %23 : vector<2x384xf32>
    %25 = arith.truncf %24 : vector<2x384xf32> to vector<2x384xbf16>
    %c0_9 = arith.constant 0 : index
    %c0_10 = arith.constant 0 : index
    %26 = vector.load %arg4[%c0_9, %c0_10] : memref<384x384xbf16, #tpu.memory_space<vmem>>, vector<384x384xbf16>
    %cst_11 = arith.constant dense<0.000000e+00> : vector<2x384xf32>
    %27 = tpu.matmul %25, %26, %cst_11 {dimension_numbers = #tpu.dot_dimension_numbers<[1], [0], [0], [1], [0, 0, 1, 1], [], []>} : vector<2x384xbf16>, vector<384x384xbf16>, vector<2x384xf32> -> vector<2x384xf32>
    %c0_12 = arith.constant 0 : index
    %c0_13 = arith.constant 0 : index
    %28 = vector.load %arg5[%c0_12, %c0_13] : memref<1x384xf32, #tpu.memory_space<vmem>>, vector<1x384xf32>
    %29 = vector.broadcast %28 : vector<1x384xf32> to vector<2x384xf32>
    %30 = arith.addf %27, %29 : vector<2x384xf32>
    %c0_14 = arith.constant 0 : index
    %c0_15 = arith.constant 0 : index
    %31 = vector.load %arg6[%c0_14, %c0_15] : memref<2x384xf32, #tpu.memory_space<vmem>>, vector<2x384xf32>
    tpu.vector_store %arg6[%c0_14, %c0_15], %30 {strides = array<i32>} : memref<2x384xf32, #tpu.memory_space<vmem>>, vector<2x384xf32>,
    return
  }
}

</mosaic_0001>

<llo_original>
// kernel: tpu_custom_call.1
$region0: #{tpu_custom_call.1}
  #allocation0 [shape = 'u32[]', space=smem, size = 0x4, offset = 0x4, fixed_abs, tag = 'smem constant byte address 0x4 - core index']
  #allocation1 [shape = 'u32[72,128]{1,0:T(1,128)}', space=vmem, size = 0x9000, scoped, tag = 'internal scratch']
  %s0 = inlined_call_operand.vmem [shape: f32[2,1], index: 0, kind: input, shape index: {}]
  %s1 = inlined_call_operand.hbm [shape: f32[1,256], index: 1, kind: input, shape index: {}]
  %s2 = inlined_call_operand.hbm [shape: bf16[256,384], index: 2, kind: input, shape index: {}]
  %s3 = inlined_call_operand.vmem [shape: f32[1,384], index: 3, kind: input, shape index: {}]
  %s4 = inlined_call_operand.hbm [shape: bf16[384,384], index: 4, kind: input, shape index: {}]
  %s5 = inlined_call_operand.vmem [shape: f32[1,384], index: 5, kind: input, shape index: {}]
  %s6 = inlined_call_operand.hbm [shape: f32[2,384], index: 6, kind: output, shape index: {}]
  %s7 = sld [smem:[#allocation0]]
  $region46: #{tpu_custom_call.1} parent=0
    _
  %s9 = ssub.s32 1, %s7
  %s10 = scalar_select 0, %s9, %s7
  $region1: #{tpu_custom_call.1} parent=0
    #allocation2 [shape = 'u8[1024]{0}', space=vmem, size = 0x400, scoped, tag = 'input window, operand 1, single buffered']
    #allocation3 [shape = 's32[1]{0}', space=sflag, size = 0x4, scoped, tag = 'scoped memory for tpu_custom_call.1']
    #allocation4 [shape = 's32[1]{0}', space=sflag, size = 0x4, scoped, tag = 'scoped memory for tpu_custom_call.1']
    #allocation5 [shape = 'u8[196608]{0}', space=vmem, size = 0x30000, scoped, tag = 'input window, operand 2, single buffered']
    #allocation6 [shape = 's32[1]{0}', space=sflag, size = 0x4, scoped, tag = 'scoped memory for tpu_custom_call.1']
    #allocation7 [shape = 'u8[294912]{0}', space=vmem, size = 0x48000, scoped, tag = 'input window, operand 4, single buffered']
    #allocation8 [shape = 'u8[3072]{0}', space=vmem, size = 0xc00, scoped, tag = 'output window, operand 0, single buffered']
    %11 = vsyncpa [#allocation3], 0
    %12 = vsyncpa [#allocation6], 0
    %13 = vsyncpa [#allocation4], 0
    // Predicated region
    $region2: #{tpu_custom_call.1} parent=1 // pred_check
      _
    $region3: #{tpu_custom_call.1} parent=1 // pred_check_branch
      %15 = sbr.rel (0) target = $region5
    $region4: #{tpu_custom_call.1} parent=1 // pred_region
      _
    $region5: #{tpu_custom_call.1} parent=1 // pred_fallthru
      _
    // Predicated region
    $region6: #{tpu_custom_call.1} parent=1 // pred_check
      _
    $region7: #{tpu_custom_call.1} parent=1 // pred_check_branch
      %17 = sbr.rel (0) target = $region9
    $region8: #{tpu_custom_call.1} parent=1 // pred_region
      %19 = vsyncadd [#allocation3], 0
      %s21 = sshll.u32 %s1, 4
      %s22 = int_to_ptr.hbm [resolvable:$true] %s21
      %s23 = sshll.u32 [#allocation2], 4
      %s24 = int_to_ptr.vmem [resolvable:$true] %s23
      %26 = dma.hbm_to_vmem [thread:$0]  %s22, 32, %s24, [#allocation3]
    $region9: #{tpu_custom_call.1} parent=1 // pred_fallthru
      _
    // Predicated region
    $region10: #{tpu_custom_call.1} parent=1 // pred_check
      _
    $region11: #{tpu_custom_call.1} parent=1 // pred_check_branch
      %28 = sbr.rel (0) target = $region13
    $region12: #{tpu_custom_call.1} parent=1 // pred_region
      %30 = vsyncadd [#allocation6], 0
      %s31 = sshll.u32 %s2, 4
      %s32 = int_to_ptr.hbm [resolvable:$true] %s31
      %s33 = sshll.u32 [#allocation5], 4
      %s34 = int_to_ptr.vmem [resolvable:$true] %s33
      %39 = dma.hbm_to_vmem [thread:$0]  %s32, 6144, %s34, [#allocation6], 192, 192, 12
    $region13: #{tpu_custom_call.1} parent=1 // pred_fallthru
      _
    // Predicated region
    $region14: #{tpu_custom_call.1} parent=1 // pred_check
      _
    $region15: #{tpu_custom_call.1} parent=1 // pred_check_branch
      %41 = sbr.rel (0) target = $region17
    $region16: #{tpu_custom_call.1} parent=1 // pred_region
      _
    $region17: #{tpu_custom_call.1} parent=1 // pred_fallthru
      _
    // Predicated region
    $region18: #{tpu_custom_call.1} parent=1 // pred_check
      _
    $region19: #{tpu_custom_call.1} parent=1 // pred_check_branch
      %43 = sbr.rel (0) target = $region21
    $region20: #{tpu_custom_call.1} parent=1 // pred_region
      %45 = vsyncadd [#allocation6], 0
      %s46 = sshll.u32 %s4, 4
      %s47 = int_to_ptr.hbm [resolvable:$true] %s46
      %s48 = sshll.u32 [#allocation7], 4
      %s49 = int_to_ptr.vmem [resolvable:$true] %s48
      %54 = dma.hbm_to_vmem [thread:$0]  %s47, 9216, %s49, [#allocation6], 192, 192, 12
    $region21: #{tpu_custom_call.1} parent=1 // pred_fallthru
      _
    // Predicated region
    $region22: #{tpu_custom_call.1} parent=1 // pred_check
      _
    $region23: #{tpu_custom_call.1} parent=1 // pred_check_branch
      %56 = sbr.rel (0) target = $region25
    $region24: #{tpu_custom_call.1} parent=1 // pred_region
      _
    $region25: #{tpu_custom_call.1} parent=1 // pred_fallthru
      _
    // Predicated region
    $region26: #{tpu_custom_call.1} parent=1 // pred_check
      _
    $region27: #{tpu_custom_call.1} parent=1 // pred_check_branch
      %58 = sbr.rel (0) target = $region29
    $region28: #{tpu_custom_call.1} parent=1 // pred_region
      %60 = dma.done [#allocation3], 32
    $region29: #{tpu_custom_call.1} parent=1 // pred_fallthru
      _
    // Predicated region
    $region30: #{tpu_custom_call.1} parent=1 // pred_check
      _
    $region31: #{tpu_custom_call.1} parent=1 // pred_check_branch
      %62 = sbr.rel (0) target = $region33
    $region32: #{tpu_custom_call.1} parent=1 // pred_region
      %64 = dma.done [#allocation6], 6144
    $region33: #{tpu_custom_call.1} parent=1 // pred_fallthru
      _
    // Predicated region
    $region34: #{tpu_custom_call.1} parent=1 // pred_check
      _
    $region35: #{tpu_custom_call.1} parent=1 // pred_check_branch
      %66 = sbr.rel (0) target = $region37
    $region36: #{tpu_custom_call.1} parent=1 // pred_region
      %68 = dma.done [#allocation6], 9216
    $region37: #{tpu_custom_call.1} parent=1 // pred_fallthru
      _
    %v69 = vld [vmem:[%s0] sm:$0x3]
    %v70 = vld [vmem:[#allocation2] sm:$0x3]
    %72 = vset.pattern.permute.xlu0 0
    %73 = vperm.xlu0 %72, %v69
    %v74 = vpop.permute.xlu0 %73
    %v77 = vperm.slane %v70, 0
    %v78 = vperm.slane %v70, 1
    %v81 = vmul.f32 %v74, %v77
    %v82 = vmul.f32 %v74, %v78
    %v83 = vlaneseq
    %v84 = vand.u32 %v83, 127
    %v85 = vadd.s32 %v84, 128
    %vm86 = vcmp.lt.s32.totalorder %v84, 128
    %vm87 = vcmp.lt.s32.totalorder %v85, 128
    %v88 = vand.u32 2147483647, %v81
    %vm89 = vcmp.le.f32.partialorder %v88, 0.7853982
    %vm90 = vcmp.lt.s32.totalorder %v81, 0
    %v91 = vand.u32 %v81, 2139095040
    %v92 = vshrl.u32 %v91, 23
    %v93 = vsub.s32 %v92, 127
    %v94 = vand.u32 2147483647, %v81
    %v95 = vand.u32 %v94, 8388607
    %v96 = vor.u32 %v95, 8388608
    %v97 = vsub.s32 0, %v96
    %v98 = vadd.s32 %v93, 1
    %vm99 = vcmp.gt.s32.totalorder %v98, 0
    %v100 = vsel %vm99, %v98, 0
    %v101 = vshrl.u32 %v100, 5
    %v102 = vand.u32 %v100, 31
    %v103 = vsub.s32 32, %v102
    %v104 = vshrl.u32 683565275, %v103
    %v105 = vshll.u32 683565275, %v102
    %v106 = vshrl.u32 2475754826, %v103
    %v107 = vor.u32 %v105, %v106
    %v108 = vshll.u32 2475754826, %v102
    %v109 = vshrl.u32 2131351028, %v103
    %v110 = vor.u32 %v108, %v109
    %v111 = vshll.u32 2131351028, %v102
    %v112 = vshrl.u32 2102212464, %v103
    %v113 = vor.u32 %v111, %v112
    %v114 = vshll.u32 2102212464, %v102
    %v115 = vshrl.u32 920167782, %v103
    %v116 = vor.u32 %v114, %v115
    %v117 = vshll.u32 920167782, %v102
    %v118 = vshrl.u32 1326507024, %v103
    %v119 = vor.u32 %v117, %v118
    %vm120 = vcmp.lt.s32.totalorder %v101, 1
    %vm121 = vcmp.lt.s32.totalorder %v101, 2
    %vm122 = vcmp.lt.s32.totalorder %v101, 3
    %vm123 = vcmp.lt.s32.totalorder %v101, 4
    %v124 = vsel %vm120, %v104, %v107
    %v125 = vsel %vm123, %v113, 2102212464
    %v126 = vsel %vm122, %v110, %v125
    %v127 = vsel %vm121, %v124, %v126
    %v128 = vsel %vm120, %v107, %v110
    %v129 = vsel %vm123, %v116, 920167782
    %v130 = vsel %vm122, %v113, %v129
    %v131 = vsel %vm121, %v128, %v130
    %v132 = vsel %vm120, %v110, %v113
    %v133 = vsel %vm123, %v119, 1326507024
    %v134 = vsel %vm122, %v116, %v133
    %v135 = vsel %vm121, %v132, %v134
    %v136 = vshll.u32 %v96, 8
    %v137 = vand.u32 %v136, 65535
    %v138 = vshrl.u32 %v136, 16
    %v139 = vand.u32 %v135, 65535
    %v140 = vshrl.u32 %v135, 16
    %v141 = vmul.u32 %v137, %v139
    %v142 = vmul.u32 %v137, %v140
    %v143 = vmul.u32 %v138, %v139
    %v144 = vmul.u32 %v138, %v140
    %v145 = vshll.u32 %v142, 16
    %v146 = vshrl.u32 %v142, 16
    %v147 = vshll.u32 %v143, 16
    %v148 = vshrl.u32 %v143, 16
    %vm149 = vc.u32 %v141, %v145
    %v150 = vsel %vm149, 1, 0
    %v151 = vadd.s32 %v141, %v145
    %v152 = vadd.s32 %v144, %v150
    %vm153 = vc.u32 %v151, %v147
    %v154 = vsel %vm153, 1, 0
    %v155 = vadd.s32 %v151, %v147
    %v156 = vadd.s32 %v152, %v154
    %v157 = vadd.s32 %v156, %v146
    %v158 = vadd.s32 %v157, %v148
    %v159 = vand.u32 %v136, 65535
    %v160 = vshrl.u32 %v136, 16
    %v161 = vand.u32 %v131, 65535
    %v162 = vshrl.u32 %v131, 16
    %v163 = vmul.u32 %v159, %v161
    %v164 = vmul.u32 %v159, %v162
    %v165 = vmul.u32 %v160, %v161
    %v166 = vmul.u32 %v160, %v162
    %v167 = vshll.u32 %v164, 16
    %v168 = vshrl.u32 %v164, 16
    %v169 = vshll.u32 %v165, 16
    %v170 = vshrl.u32 %v165, 16
    %vm171 = vc.u32 %v163, %v167
    %v172 = vsel %vm171, 1, 0
    %v173 = vadd.s32 %v163, %v167
    %v174 = vadd.s32 %v166, %v172
    %vm175 = vc.u32 %v173, %v169
    %v176 = vsel %vm175, 1, 0
    %v177 = vadd.s32 %v173, %v169
    %v178 = vadd.s32 %v174, %v176
    %v179 = vadd.s32 %v178, %v168
    %v180 = vadd.s32 %v179, %v170
    %v181 = vmul.u32 %v136, %v127
    %v182 = vadd.s32 %v158, %v177
    %vm183 = vc.u32 %v158, %v177
    %v184 = vadd.s32 %v180, 1
    %v185 = vsel %vm183, %v184, %v180
    %v186 = vadd.s32 %v181, %v185
    %v187 = vadd.s32 %v186, 536870912
    %v188 = vshrl.u32 %v187, 30
    %v189 = vshll.u32 %v188, 30
    %v190 = vsub.s32 %v186, %v189
    %vm191 = vcmp.lt.s32.totalorder %v190, 0
    %v192 = vsub.s32 0, %v190
    %v193 = vsel %vm191, %v192, %v190
    %v194 = vclz %v193
    %v195 = vsub.s32 %v194, 2
    %vm196 = vcmp.gt.s32.totalorder 0, %v195
    %v197 = vsel %vm196, 0, %v195
    %v198 = vsub.s32 32, %v197
    %v199 = vshll.u32 %v190, %v197
    %v200 = vshrl.u32 %v182, %v198
    %v201 = vor.u32 %v199, %v200
    %v202 = vsub.s32 4294967266, %v197
    %v203 = vadd.s32 %v202, 127
    %v204 = vshll.u32 %v203, 23
    %v205 = vor.u32 4788187, %v204
    %v206 = vand.u32 2147483647, %v205
    %v208 = vcvt.s32.f32 %v201
    %v209 = vmul.f32 %v208, %v206
    %v210 = vxor.u32 %v209, 2147483648
    %v211 = vsel %vm90, %v210, %v209
    %v212 = vsub.s32 4, %v188
    %v213 = vsel %vm90, %v212, %v188
    %v214 = vsel %vm89, %v81, %v211
    %v215 = vsel %vm89, 0, %v213
    %v216 = vmul.f32 %v214, %v214
    %v217 = vmul.f32 %v216, -0.001358992
    %v218 = vadd.f32 %v217, 0.041655596
    %v219 = vmul.f32 %v216, %v218
    %v220 = vadd.f32 %v219, -0.4999988
    %v221 = vmul.f32 %v216, %v220
    %v222 = vadd.f32 1.0, %v221
    %v223 = vmul.f32 %v214, %v214
    %v224 = vmul.f32 %v223, -0.00019511016
    %v225 = vadd.f32 %v224, 0.008332121
    %v226 = vmul.f32 %v223, %v225
    %v227 = vadd.f32 %v226, -0.16666654
    %v228 = vmul.f32 %v223, %v227
    %v229 = vadd.f32 %v228, 1.0
    %v230 = vmul.f32 %v229, %v214
    %vm231 = vweird.f32 %v81
    %v232 = vand.u32 %v215, 3
    %vm233 = vcmp.lt.s32.totalorder %v232, 2
    %vm234 = vcmp.eq.s32.totalorder %v232, 0
    %v235 = vxor.u32 %v230, 2147483648
    %v236 = vsel %vm234, %v222, %v235
    %vm237 = vcmp.eq.s32.totalorder %v232, 2
    %v238 = vxor.u32 %v222, 2147483648
    %v239 = vsel %vm237, %v238, %v230
    %v240 = vsel %vm233, %v236, %v239
    %v241 = vsel %vm231, nan, %v240
    %v242 = vand.u32 2147483647, %v82
    %vm243 = vcmp.le.f32.partialorder %v242, 0.7853982
    %vm244 = vcmp.lt.s32.totalorder %v82, 0
    %v245 = vand.u32 %v82, 2139095040
    %v246 = vshrl.u32 %v245, 23
    %v247 = vsub.s32 %v246, 127
    %v248 = vand.u32 2147483647, %v82
    %v249 = vand.u32 %v248, 8388607
    %v250 = vor.u32 %v249, 8388608
    %v251 = vsub.s32 0, %v250
    %v252 = vadd.s32 %v247, 1
    %vm253 = vcmp.gt.s32.totalorder %v252, 0
    %v254 = vsel %vm253, %v252, 0
    %v255 = vshrl.u32 %v254, 5
    %v256 = vand.u32 %v254, 31
    %v257 = vsub.s32 32, %v256
    %v258 = vshrl.u32 683565275, %v257
    %v259 = vshll.u32 683565275, %v256
    %v260 = vshrl.u32 2475754826, %v257
    %v261 = vor.u32 %v259, %v260
    %v262 = vshll.u32 2475754826, %v256
    %v263 = vshrl.u32 2131351028, %v257
    %v264 = vor.u32 %v262, %v263
    %v265 = vshll.u32 2131351028, %v256
    %v266 = vshrl.u32 2102212464, %v257
    %v267 = vor.u32 %v265, %v266
    %v268 = vshll.u32 2102212464, %v256
    %v269 = vshrl.u32 920167782, %v257
    %v270 = vor.u32 %v268, %v269
    %v271 = vshll.u32 920167782, %v256
    %v272 = vshrl.u32 1326507024, %v257
    %v273 = vor.u32 %v271, %v272
    %vm274 = vcmp.lt.s32.totalorder %v255, 1
    %vm275 = vcmp.lt.s32.totalorder %v255, 2
    %vm276 = vcmp.lt.s32.totalorder %v255, 3
    %vm277 = vcmp.lt.s32.totalorder %v255, 4
    %v278 = vsel %vm274, %v258, %v261
    %v279 = vsel %vm277, %v267, 2102212464
    %v280 = vsel %vm276, %v264, %v279
    %v281 = vsel %vm275, %v278, %v280
    %v282 = vsel %vm274, %v261, %v264
    %v283 = vsel %vm277, %v270, 920167782
    %v284 = vsel %vm276, %v267, %v283
    %v285 = vsel %vm275, %v282, %v284
    %v286 = vsel %vm274, %v264, %v267
    %v287 = vsel %vm277, %v273, 1326507024
    %v288 = vsel %vm276, %v270, %v287
    %v289 = vsel %vm275, %v286, %v288
    %v290 = vshll.u32 %v250, 8
    %v291 = vand.u32 %v290, 65535
    %v292 = vshrl.u32 %v290, 16
    %v293 = vand.u32 %v289, 65535
    %v294 = vshrl.u32 %v289, 16
    %v295 = vmul.u32 %v291, %v293
    %v296 = vmul.u32 %v291, %v294
    %v297 = vmul.u32 %v292, %v293
    %v298 = vmul.u32 %v292, %v294
    %v299 = vshll.u32 %v296, 16
    %v300 = vshrl.u32 %v296, 16
    %v301 = vshll.u32 %v297, 16
    %v302 = vshrl.u32 %v297, 16
    %vm303 = vc.u32 %v295, %v299
    %v304 = vsel %vm303, 1, 0
    %v305 = vadd.s32 %v295, %v299
    %v306 = vadd.s32 %v298, %v304
    %vm307 = vc.u32 %v305, %v301
    %v308 = vsel %vm307, 1, 0
    %v309 = vadd.s32 %v305, %v301
    %v310 = vadd.s32 %v306, %v308
    %v311 = vadd.s32 %v310, %v300
    %v312 = vadd.s32 %v311, %v302
    %v313 = vand.u32 %v290, 65535
    %v314 = vshrl.u32 %v290, 16
    %v315 = vand.u32 %v285, 65535
    %v316 = vshrl.u32 %v285, 16
    %v317 = vmul.u32 %v313, %v315
    %v318 = vmul.u32 %v313, %v316
    %v319 = vmul.u32 %v314, %v315
    %v320 = vmul.u32 %v314, %v316
    %v321 = vshll.u32 %v318, 16
    %v322 = vshrl.u32 %v318, 16
    %v323 = vshll.u32 %v319, 16
    %v324 = vshrl.u32 %v319, 16
    %vm325 = vc.u32 %v317, %v321
    %v326 = vsel %vm325, 1, 0
    %v327 = vadd.s32 %v317, %v321
    %v328 = vadd.s32 %v320, %v326
    %vm329 = vc.u32 %v327, %v323
    %v330 = vsel %vm329, 1, 0
    %v331 = vadd.s32 %v327, %v323
    %v332 = vadd.s32 %v328, %v330
    %v333 = vadd.s32 %v332, %v322
    %v334 = vadd.s32 %v333, %v324
    %v335 = vmul.u32 %v290, %v281
    %v336 = vadd.s32 %v312, %v331
    %vm337 = vc.u32 %v312, %v331
    %v338 = vadd.s32 %v334, 1
    %v339 = vsel %vm337, %v338, %v334
    %v340 = vadd.s32 %v335, %v339
    %v341 = vadd.s32 %v340, 536870912
    %v342 = vshrl.u32 %v341, 30
    %v343 = vshll.u32 %v342, 30
    %v344 = vsub.s32 %v340, %v343
    %vm345 = vcmp.lt.s32.totalorder %v344, 0
    %v346 = vsub.s32 0, %v344
    %v347 = vsel %vm345, %v346, %v344
    %v348 = vclz %v347
    %v349 = vsub.s32 %v348, 2
    %vm350 = vcmp.gt.s32.totalorder 0, %v349
    %v351 = vsel %vm350, 0, %v349
    %v352 = vsub.s32 32, %v351
    %v353 = vshll.u32 %v344, %v351
    %v354 = vshrl.u32 %v336, %v352
    %v355 = vor.u32 %v353, %v354
    %v356 = vsub.s32 4294967266, %v351
    %v357 = vadd.s32 %v356, 127
    %v358 = vshll.u32 %v357, 23
    %v359 = vor.u32 4788187, %v358
    %v360 = vand.u32 2147483647, %v359
    %v362 = vcvt.s32.f32 %v355
    %v363 = vmul.f32 %v362, %v360
    %v364 = vxor.u32 %v363, 2147483648
    %v365 = vsel %vm244, %v364, %v363
    %v366 = vsub.s32 4, %v342
    %v367 = vsel %vm244, %v366, %v342
    %v368 = vsel %vm243, %v82, %v365
    %v369 = vsel %vm243, 0, %v367
    %v370 = vmul.f32 %v368, %v368
    %v371 = vmul.f32 %v370, -0.001358992
    %v372 = vadd.f32 %v371, 0.041655596
    %v373 = vmul.f32 %v370, %v372
    %v374 = vadd.f32 %v373, -0.4999988
    %v375 = vmul.f32 %v370, %v374
    %v376 = vadd.f32 1.0, %v375
    %v377 = vmul.f32 %v368, %v368
    %v378 = vmul.f32 %v377, -0.00019511016
    %v379 = vadd.f32 %v378, 0.008332121
    %v380 = vmul.f32 %v377, %v379
    %v381 = vadd.f32 %v380, -0.16666654
    %v382 = vmul.f32 %v377, %v381
    %v383 = vadd.f32 %v382, 1.0
    %v384 = vmul.f32 %v383, %v368
    %vm385 = vweird.f32 %v82
    %v386 = vand.u32 %v369, 3
    %vm387 = vcmp.lt.s32.totalorder %v386, 2
    %vm388 = vcmp.eq.s32.totalorder %v386, 0
    %v389 = vxor.u32 %v384, 2147483648
    %v390 = vsel %vm388, %v376, %v389
    %vm391 = vcmp.eq.s32.totalorder %v386, 2
    %v392 = vxor.u32 %v376, 2147483648
    %v393 = vsel %vm391, %v392, %v384
    %v394 = vsel %vm387, %v390, %v393
    %v395 = vsel %vm385, nan, %v394
    %v396 = vand.u32 2147483647, %v81
    %vm397 = vcmp.le.f32.partialorder %v396, 0.7853982
    %vm398 = vcmp.lt.s32.totalorder %v81, 0
    %v399 = vand.u32 %v81, 2139095040
    %v400 = vshrl.u32 %v399, 23
    %v401 = vsub.s32 %v400, 127
    %v402 = vand.u32 2147483647, %v81
    %v403 = vand.u32 %v402, 8388607
    %v404 = vor.u32 %v403, 8388608
    %v405 = vsub.s32 0, %v404
    %v406 = vadd.s32 %v401, 1
    %vm407 = vcmp.gt.s32.totalorder %v406, 0
    %v408 = vsel %vm407, %v406, 0
    %v409 = vshrl.u32 %v408, 5
    %v410 = vand.u32 %v408, 31
    %v411 = vsub.s32 32, %v410
    %v412 = vshrl.u32 683565275, %v411
    %v413 = vshll.u32 683565275, %v410
    %v414 = vshrl.u32 2475754826, %v411
    %v415 = vor.u32 %v413, %v414
    %v416 = vshll.u32 2475754826, %v410
    %v417 = vshrl.u32 2131351028, %v411
    %v418 = vor.u32 %v416, %v417
    %v419 = vshll.u32 2131351028, %v410
    %v420 = vshrl.u32 2102212464, %v411
    %v421 = vor.u32 %v419, %v420
    %v422 = vshll.u32 2102212464, %v410
    %v423 = vshrl.u32 920167782, %v411
    %v424 = vor.u32 %v422, %v423
    %v425 = vshll.u32 920167782, %v410
    %v426 = vshrl.u32 1326507024, %v411
    %v427 = vor.u32 %v425, %v426
    %vm428 = vcmp.lt.s32.totalorder %v409, 1
    %vm429 = vcmp.lt.s32.totalorder %v409, 2
    %vm430 = vcmp.lt.s32.totalorder %v409, 3
    %vm431 = vcmp.lt.s32.totalorder %v409, 4
    %v432 = vsel %vm428, %v412, %v415
    %v433 = vsel %vm431, %v421, 2102212464
    %v434 = vsel %vm430, %v418, %v433
    %v435 = vsel %vm429, %v432, %v434
    %v436 = vsel %vm428, %v415, %v418
    %v437 = vsel %vm431, %v424, 920167782
    %v438 = vsel %vm430, %v421, %v437
    %v439 = vsel %vm429, %v436, %v438
    %v440 = vsel %vm428, %v418, %v421
    %v441 = vsel %vm431, %v427, 1326507024
    %v442 = vsel %vm430, %v424, %v441
    %v443 = vsel %vm429, %v440, %v442
    %v444 = vshll.u32 %v404, 8
    %v445 = vand.u32 %v444, 65535
    %v446 = vshrl.u32 %v444, 16
    %v447 = vand.u32 %v443, 65535
    %v448 = vshrl.u32 %v443, 16
    %v449 = vmul.u32 %v445, %v447
    %v450 = vmul.u32 %v445, %v448
    %v451 = vmul.u32 %v446, %v447
    %v452 = vmul.u32 %v446, %v448
    %v453 = vshll.u32 %v450, 16
    %v454 = vshrl.u32 %v450, 16
    %v455 = vshll.u32 %v451, 16
    %v456 = vshrl.u32 %v451, 16
    %vm457 = vc.u32 %v449, %v453
    %v458 = vsel %vm457, 1, 0
    %v459 = vadd.s32 %v449, %v453
    %v460 = vadd.s32 %v452, %v458
    %vm461 = vc.u32 %v459, %v455
    %v462 = vsel %vm461, 1, 0
    %v463 = vadd.s32 %v459, %v455
    %v464 = vadd.s32 %v460, %v462
    %v465 = vadd.s32 %v464, %v454
    %v466 = vadd.s32 %v465, %v456
    %v467 = vand.u32 %v444, 65535
    %v468 = vshrl.u32 %v444, 16
    %v469 = vand.u32 %v439, 65535
    %v470 = vshrl.u32 %v439, 16
    %v471 = vmul.u32 %v467, %v469
    %v472 = vmul.u32 %v467, %v470
    %v473 = vmul.u32 %v468, %v469
    %v474 = vmul.u32 %v468, %v470
    %v475 = vshll.u32 %v472, 16
    %v476 = vshrl.u32 %v472, 16
    %v477 = vshll.u32 %v473, 16
    %v478 = vshrl.u32 %v473, 16
    %vm479 = vc.u32 %v471, %v475
    %v480 = vsel %vm479, 1, 0
    %v481 = vadd.s32 %v471, %v475
    %v482 = vadd.s32 %v474, %v480
    %vm483 = vc.u32 %v481, %v477
    %v484 = vsel %vm483, 1, 0
    %v485 = vadd.s32 %v481, %v477
    %v486 = vadd.s32 %v482, %v484
    %v487 = vadd.s32 %v486, %v476
    %v488 = vadd.s32 %v487, %v478
    %v489 = vmul.u32 %v444, %v435
    %v490 = vadd.s32 %v466, %v485
    %vm491 = vc.u32 %v466, %v485
    %v492 = vadd.s32 %v488, 1
    %v493 = vsel %vm491, %v492, %v488
    %v494 = vadd.s32 %v489, %v493
    %v495 = vadd.s32 %v494, 536870912
    %v496 = vshrl.u32 %v495, 30
    %v497 = vshll.u32 %v496, 30
    %v498 = vsub.s32 %v494, %v497
    %vm499 = vcmp.lt.s32.totalorder %v498, 0
    %v500 = vsub.s32 0, %v498
    %v501 = vsel %vm499, %v500, %v498
    %v502 = vclz %v501
    %v503 = vsub.s32 %v502, 2
    %vm504 = vcmp.gt.s32.totalorder 0, %v503
    %v505 = vsel %vm504, 0, %v503
    %v506 = vsub.s32 32, %v505
    %v507 = vshll.u32 %v498, %v505
    %v508 = vshrl.u32 %v490, %v506
    %v509 = vor.u32 %v507, %v508
    %v510 = vsub.s32 4294967266, %v505
    %v511 = vadd.s32 %v510, 127
    %v512 = vshll.u32 %v511, 23
    %v513 = vor.u32 4788187, %v512
    %v514 = vand.u32 2147483647, %v513
    %v516 = vcvt.s32.f32 %v509
    %v517 = vmul.f32 %v516, %v514
    %v518 = vxor.u32 %v517, 2147483648
    %v519 = vsel %vm398, %v518, %v517
    %v520 = vsub.s32 4, %v496
    %v521 = vsel %vm398, %v520, %v496
    %v522 = vsel %vm397, %v81, %v519
    %v523 = vsel %vm397, 0, %v521
    %v524 = vmul.f32 %v522, %v522
    %v525 = vmul.f32 %v524, -0.001358992
    %v526 = vadd.f32 %v525, 0.041655596
    %v527 = vmul.f32 %v524, %v526
    %v528 = vadd.f32 %v527, -0.4999988
    %v529 = vmul.f32 %v524, %v528
    %v530 = vadd.f32 1.0, %v529
    %v531 = vmul.f32 %v522, %v522
    %v532 = vmul.f32 %v531, -0.00019511016
    %v533 = vadd.f32 %v532, 0.008332121
    %v534 = vmul.f32 %v531, %v533
    %v535 = vadd.f32 %v534, -0.16666654
    %v536 = vmul.f32 %v531, %v535
    %v537 = vadd.f32 %v536, 1.0
    %v538 = vmul.f32 %v537, %v522
    %vm539 = vweird.f32 %v81
    %v540 = vadd.s32 %v523, 3
    %v541 = vand.u32 %v540, 3
    %vm542 = vcmp.lt.s32.totalorder %v541, 2
    %vm543 = vcmp.eq.s32.totalorder %v541, 0
    %v544 = vxor.u32 %v538, 2147483648
    %v545 = vsel %vm543, %v530, %v544
    %vm546 = vcmp.eq.s32.totalorder %v541, 2
    %v547 = vxor.u32 %v530, 2147483648
    %v548 = vsel %vm546, %v547, %v538
    %v549 = vsel %vm542, %v545, %v548
    %v550 = vsel %vm539, nan, %v549
    %v551 = vand.u32 2147483647, %v82
    %vm552 = vcmp.le.f32.partialorder %v551, 0.7853982
    %vm553 = vcmp.lt.s32.totalorder %v82, 0
    %v554 = vand.u32 %v82, 2139095040
    %v555 = vshrl.u32 %v554, 23
    %v556 = vsub.s32 %v555, 127
    %v557 = vand.u32 2147483647, %v82
    %v558 = vand.u32 %v557, 8388607
    %v559 = vor.u32 %v558, 8388608
    %v560 = vsub.s32 0, %v559
    %v561 = vadd.s32 %v556, 1
    %vm562 = vcmp.gt.s32.totalorder %v561, 0
    %v563 = vsel %vm562, %v561, 0
    %v564 = vshrl.u32 %v563, 5
    %v565 = vand.u32 %v563, 31
    %v566 = vsub.s32 32, %v565
    %v567 = vshrl.u32 683565275, %v566
    %v568 = vshll.u32 683565275, %v565
    %v569 = vshrl.u32 2475754826, %v566
    %v570 = vor.u32 %v568, %v569
    %v571 = vshll.u32 2475754826, %v565
    %v572 = vshrl.u32 2131351028, %v566
    %v573 = vor.u32 %v571, %v572
    %v574 = vshll.u32 2131351028, %v565
    %v575 = vshrl.u32 2102212464, %v566
    %v576 = vor.u32 %v574, %v575
    %v577 = vshll.u32 2102212464, %v565
    %v578 = vshrl.u32 920167782, %v566
    %v579 = vor.u32 %v577, %v578
    %v580 = vshll.u32 920167782, %v565
    %v581 = vshrl.u32 1326507024, %v566
    %v582 = vor.u32 %v580, %v581
    %vm583 = vcmp.lt.s32.totalorder %v564, 1
    %vm584 = vcmp.lt.s32.totalorder %v564, 2
    %vm585 = vcmp.lt.s32.totalorder %v564, 3
    %vm586 = vcmp.lt.s32.totalorder %v564, 4
    %v587 = vsel %vm583, %v567, %v570
    %v588 = vsel %vm586, %v576, 2102212464
    %v589 = vsel %vm585, %v573, %v588
    %v590 = vsel %vm584, %v587, %v589
    %v591 = vsel %vm583, %v570, %v573
    %v592 = vsel %vm586, %v579, 920167782
    %v593 = vsel %vm585, %v576, %v592
    %v594 = vsel %vm584, %v591, %v593
    %v595 = vsel %vm583, %v573, %v576
    %v596 = vsel %vm586, %v582, 1326507024
    %v597 = vsel %vm585, %v579, %v596
    %v598 = vsel %vm584, %v595, %v597
    %v599 = vshll.u32 %v559, 8
    %v600 = vand.u32 %v599, 65535
    %v601 = vshrl.u32 %v599, 16
    %v602 = vand.u32 %v598, 65535
    %v603 = vshrl.u32 %v598, 16
    %v604 = vmul.u32 %v600, %v602
    %v605 = vmul.u32 %v600, %v603
    %v606 = vmul.u32 %v601, %v602
    %v607 = vmul.u32 %v601, %v603
    %v608 = vshll.u32 %v605, 16
    %v609 = vshrl.u32 %v605, 16
    %v610 = vshll.u32 %v606, 16
    %v611 = vshrl.u32 %v606, 16
    %vm612 = vc.u32 %v604, %v608
    %v613 = vsel %vm612, 1, 0
    %v614 = vadd.s32 %v604, %v608
    %v615 = vadd.s32 %v607, %v613
    %vm616 = vc.u32 %v614, %v610
    %v617 = vsel %vm616, 1, 0
    %v618 = vadd.s32 %v614, %v610
    %v619 = vadd.s32 %v615, %v617
    %v620 = vadd.s32 %v619, %v609
    %v621 = vadd.s32 %v620, %v611
    %v622 = vand.u32 %v599, 65535
    %v623 = vshrl.u32 %v599, 16
    %v624 = vand.u32 %v594, 65535
    %v625 = vshrl.u32 %v594, 16
    %v626 = vmul.u32 %v622, %v624
    %v627 = vmul.u32 %v622, %v625
    %v628 = vmul.u32 %v623, %v624
    %v629 = vmul.u32 %v623, %v625
    %v630 = vshll.u32 %v627, 16
    %v631 = vshrl.u32 %v627, 16
    %v632 = vshll.u32 %v628, 16
    %v633 = vshrl.u32 %v628, 16
    %vm634 = vc.u32 %v626, %v630
    %v635 = vsel %vm634, 1, 0
    %v636 = vadd.s32 %v626, %v630
    %v637 = vadd.s32 %v629, %v635
    %vm638 = vc.u32 %v636, %v632
    %v639 = vsel %vm638, 1, 0
    %v640 = vadd.s32 %v636, %v632
    %v641 = vadd.s32 %v637, %v639
    %v642 = vadd.s32 %v641, %v631
    %v643 = vadd.s32 %v642, %v633
    %v644 = vmul.u32 %v599, %v590
    %v645 = vadd.s32 %v621, %v640
    %vm646 = vc.u32 %v621, %v640
    %v647 = vadd.s32 %v643, 1
    %v648 = vsel %vm646, %v647, %v643
    %v649 = vadd.s32 %v644, %v648
    %v650 = vadd.s32 %v649, 536870912
    %v651 = vshrl.u32 %v650, 30
    %v652 = vshll.u32 %v651, 30
    %v653 = vsub.s32 %v649, %v652
    %vm654 = vcmp.lt.s32.totalorder %v653, 0
    %v655 = vsub.s32 0, %v653
    %v656 = vsel %vm654, %v655, %v653
    %v657 = vclz %v656
    %v658 = vsub.s32 %v657, 2
    %vm659 = vcmp.gt.s32.totalorder 0, %v658
    %v660 = vsel %vm659, 0, %v658
    %v661 = vsub.s32 32, %v660
    %v662 = vshll.u32 %v653, %v660
    %v663 = vshrl.u32 %v645, %v661
    %v664 = vor.u32 %v662, %v663
    %v665 = vsub.s32 4294967266, %v660
    %v666 = vadd.s32 %v665, 127
    %v667 = vshll.u32 %v666, 23
    %v668 = vor.u32 4788187, %v667
    %v669 = vand.u32 2147483647, %v668
    %v671 = vcvt.s32.f32 %v664
    %v672 = vmul.f32 %v671, %v669
    %v673 = vxor.u32 %v672, 2147483648
    %v674 = vsel %vm553, %v673, %v672
    %v675 = vsub.s32 4, %v651
    %v676 = vsel %vm553, %v675, %v651
    %v677 = vsel %vm552, %v82, %v674
    %v678 = vsel %vm552, 0, %v676
    %v679 = vmul.f32 %v677, %v677
    %v680 = vmul.f32 %v679, -0.001358992
    %v681 = vadd.f32 %v680, 0.041655596
    %v682 = vmul.f32 %v679, %v681
    %v683 = vadd.f32 %v682, -0.4999988
    %v684 = vmul.f32 %v679, %v683
    %v685 = vadd.f32 1.0, %v684
    %v686 = vmul.f32 %v677, %v677
    %v687 = vmul.f32 %v686, -0.00019511016
    %v688 = vadd.f32 %v687, 0.008332121
    %v689 = vmul.f32 %v686, %v688
    %v690 = vadd.f32 %v689, -0.16666654
    %v691 = vmul.f32 %v686, %v690
    %v692 = vadd.f32 %v691, 1.0
    %v693 = vmul.f32 %v692, %v677
    %vm694 = vweird.f32 %v82
    %v695 = vadd.s32 %v678, 3
    %v696 = vand.u32 %v695, 3
    %vm697 = vcmp.lt.s32.totalorder %v696, 2
    %vm698 = vcmp.eq.s32.totalorder %v696, 0
    %v699 = vxor.u32 %v693, 2147483648
    %v700 = vsel %vm698, %v685, %v699
    %vm701 = vcmp.eq.s32.totalorder %v696, 2
    %v702 = vxor.u32 %v685, 2147483648
    %v703 = vsel %vm701, %v702, %v693
    %v704 = vsel %vm697, %v700, %v703
    %v705 = vsel %vm694, nan, %v704
    %v706 = vsel %vm86, %v241, %v550
    %v707 = vsel %vm87, %v395, %v705
    %v708 = vpack.c.bf16 %v706, %v706
    %v709 = vpack.c.bf16 %v707, %v707
    %v710 = vld [vmem:[#allocation5] sm:$0xff]
    %v711 = vld [vmem:[#allocation5 + $0x8] sm:$0xf]
    %v712 = vld [vmem:[#allocation5 + $0xc] sm:$0xff]
    %v713 = vld [vmem:[#allocation5 + $0x14] sm:$0xf]
    %v714 = vld [vmem:[#allocation5 + $0x18] sm:$0xff]
    %v715 = vld [vmem:[#allocation5 + $0x20] sm:$0xf]
    %v716 = vld [vmem:[#allocation5 + $0x24] sm:$0xff]
    %v717 = vld [vmem:[#allocation5 + $0x2c] sm:$0xf]
    %v718 = vld [vmem:[#allocation5 + $0x30] sm:$0xff]
    %v719 = vld [vmem:[#allocation5 + $0x38] sm:$0xf]
    %v720 = vld [vmem:[#allocation5 + $0x3c] sm:$0xff]
    %v721 = vld [vmem:[#allocation5 + $0x44] sm:$0xf]
    %v722 = vld [vmem:[#allocation5 + $0x48] sm:$0xff]
    %v723 = vld [vmem:[#allocation5 + $0x50] sm:$0xf]
    %v724 = vld [vmem:[#allocation5 + $0x54] sm:$0xff]
    %v725 = vld [vmem:[#allocation5 + $0x5c] sm:$0xf]
    %v726 = vld [vmem:[#allocation5 + $0x60] sm:$0xff]
    %v727 = vld [vmem:[#allocation5 + $0x68] sm:$0xf]
    %v728 = vld [vmem:[#allocation5 + $0x6c] sm:$0xff]
    %v729 = vld [vmem:[#allocation5 + $0x74] sm:$0xf]
    %v730 = vld [vmem:[#allocation5 + $0x78] sm:$0xff]
    %v731 = vld [vmem:[#allocation5 + $0x80] sm:$0xf]
    %v732 = vld [vmem:[#allocation5 + $0x84] sm:$0xff]
    %v733 = vld [vmem:[#allocation5 + $0x8c] sm:$0xf]
    %v734 = vld [vmem:[#allocation5 + $0x90] sm:$0xff]
    %v735 = vld [vmem:[#allocation5 + $0x98] sm:$0xf]
    %v736 = vld [vmem:[#allocation5 + $0x9c] sm:$0xff]
    %v737 = vld [vmem:[#allocation5 + $0xa4] sm:$0xf]
    %v738 = vld [vmem:[#allocation5 + $0xa8] sm:$0xff]
    %v739 = vld [vmem:[#allocation5 + $0xb0] sm:$0xf]
    %v740 = vld [vmem:[#allocation5 + $0xb4] sm:$0xff]
    %v741 = vld [vmem:[#allocation5 + $0xbc] sm:$0xf]
    %v742 = vld [vmem:[#allocation5 + $0xc0] sm:$0xff]
    %v743 = vld [vmem:[#allocation5 + $0xc8] sm:$0xf]
    %v744 = vld [vmem:[#allocation5 + $0xcc] sm:$0xff]
    %v745 = vld [vmem:[#allocation5 + $0xd4] sm:$0xf]
    %v746 = vld [vmem:[#allocation5 + $0xd8] sm:$0xff]
    %v747 = vld [vmem:[#allocation5 + $0xe0] sm:$0xf]
    %v748 = vld [vmem:[#allocation5 + $0xe4] sm:$0xff]
    %v749 = vld [vmem:[#allocation5 + $0xec] sm:$0xf]
    %v750 = vld [vmem:[#allocation5 + $0xf0] sm:$0xff]
    %v751 = vld [vmem:[#allocation5 + $0xf8] sm:$0xf]
    %v752 = vld [vmem:[#allocation5 + $0xfc] sm:$0xff]
    %v753 = vld [vmem:[#allocation5 + $0x104] sm:$0xf]
    %v754 = vld [vmem:[#allocation5 + $0x108] sm:$0xff]
    %v755 = vld [vmem:[#allocation5 + $0x110] sm:$0xf]
    %v756 = vld [vmem:[#allocation5 + $0x114] sm:$0xff]
    %v757 = vld [vmem:[#allocation5 + $0x11c] sm:$0xf]
    %v758 = vld [vmem:[#allocation5 + $0x120] sm:$0xff]
    %v759 = vld [vmem:[#allocation5 + $0x128] sm:$0xf]
    %v760 = vld [vmem:[#allocation5 + $0x12c] sm:$0xff]
    %v761 = vld [vmem:[#allocation5 + $0x134] sm:$0xf]
    %v762 = vld [vmem:[#allocation5 + $0x138] sm:$0xff]
    %v763 = vld [vmem:[#allocation5 + $0x140] sm:$0xf]
    %v764 = vld [vmem:[#allocation5 + $0x144] sm:$0xff]
    %v765 = vld [vmem:[#allocation5 + $0x14c] sm:$0xf]
    %v766 = vld [vmem:[#allocation5 + $0x150] sm:$0xff]
    %v767 = vld [vmem:[#allocation5 + $0x158] sm:$0xf]
    %v768 = vld [vmem:[#allocation5 + $0x15c] sm:$0xff]
    %v769 = vld [vmem:[#allocation5 + $0x164] sm:$0xf]
    %v770 = vld [vmem:[#allocation5 + $0x168] sm:$0xff]
    %v771 = vld [vmem:[#allocation5 + $0x170] sm:$0xf]
    %v772 = vld [vmem:[#allocation5 + $0x174] sm:$0xff]
    %v773 = vld [vmem:[#allocation5 + $0x17c] sm:$0xf]
    %v774 = vld [vmem:[%s3] sm:$0x7]
    %v776 = vperm.slane %v774, 0
    %v777 = vperm.slane %v774, 1
    %v778 = vperm.slane %v774, 2
    %v846 = vunpack.c.l.b16 %v710
    %v847 = vunpack.c.h.b16 %v710
    %v848 = vunpack.c.l.b16 %v711
    %v849 = vunpack.c.l.b16 %v712
    %v850 = vunpack.c.h.b16 %v712
    %v851 = vunpack.c.l.b16 %v713
    %v852 = vunpack.c.l.b16 %v714
    %v853 = vunpack.c.h.b16 %v714
    %v854 = vunpack.c.l.b16 %v715
    %v855 = vunpack.c.l.b16 %v716
    %v856 = vunpack.c.h.b16 %v716
    %v857 = vunpack.c.l.b16 %v717
    %v858 = vunpack.c.l.b16 %v718
    %v859 = vunpack.c.h.b16 %v718
    %v860 = vunpack.c.l.b16 %v719
    %v861 = vunpack.c.l.b16 %v720
    %v862 = vunpack.c.h.b16 %v720
    %v863 = vunpack.c.l.b16 %v721
    %v864 = vunpack.c.l.b16 %v722
    %v865 = vunpack.c.h.b16 %v722
    %v866 = vunpack.c.l.b16 %v723
    %v867 = vunpack.c.l.b16 %v724
    %v868 = vunpack.c.h.b16 %v724
    %v869 = vunpack.c.l.b16 %v725
    %v870 = vunpack.c.l.b16 %v726
    %v871 = vunpack.c.h.b16 %v726
    %v872 = vunpack.c.l.b16 %v727
    %v873 = vunpack.c.l.b16 %v728
    %v874 = vunpack.c.h.b16 %v728
    %v875 = vunpack.c.l.b16 %v729
    %v876 = vunpack.c.l.b16 %v730
    %v877 = vunpack.c.h.b16 %v730
    %v878 = vunpack.c.l.b16 %v731
    %v879 = vunpack.c.l.b16 %v732
    %v880 = vunpack.c.h.b16 %v732
    %v881 = vunpack.c.l.b16 %v733
    %v882 = vunpack.c.l.b16 %v734
    %v883 = vunpack.c.h.b16 %v734
    %v884 = vunpack.c.l.b16 %v735
    %v885 = vunpack.c.l.b16 %v736
    %v886 = vunpack.c.h.b16 %v736
    %v887 = vunpack.c.l.b16 %v737
    %v888 = vunpack.c.l.b16 %v738
    %v889 = vunpack.c.h.b16 %v738
    %v890 = vunpack.c.l.b16 %v739
    %v891 = vunpack.c.l.b16 %v740
    %v892 = vunpack.c.h.b16 %v740
    %v893 = vunpack.c.l.b16 %v741
    %v894 = vunpack.c.l.b16 %v742
    %v895 = vunpack.c.h.b16 %v742
    %v896 = vunpack.c.l.b16 %v743
    %v897 = vunpack.c.l.b16 %v744
    %v898 = vunpack.c.h.b16 %v744
    %v899 = vunpack.c.l.b16 %v745
    %v900 = vunpack.c.l.b16 %v746
    %v901 = vunpack.c.h.b16 %v746
    %v902 = vunpack.c.l.b16 %v747
    %v903 = vunpack.c.l.b16 %v748
    %v904 = vunpack.c.h.b16 %v748
    %v905 = vunpack.c.l.b16 %v749
    %v906 = vunpack.c.l.b16 %v750
    %v907 = vunpack.c.h.b16 %v750
    %v908 = vunpack.c.l.b16 %v751
    %v909 = vunpack.c.l.b16 %v752
    %v910 = vunpack.c.h.b16 %v752
    %v911 = vunpack.c.l.b16 %v753
    %v912 = vunpack.c.l.b16 %v754
    %v913 = vunpack.c.h.b16 %v754
    %v914 = vunpack.c.l.b16 %v755
    %v915 = vunpack.c.l.b16 %v756
    %v916 = vunpack.c.h.b16 %v756
    %v917 = vunpack.c.l.b16 %v757
    %v918 = vunpack.c.l.b16 %v758
    %v919 = vunpack.c.h.b16 %v758
    %v920 = vunpack.c.l.b16 %v759
    %v921 = vunpack.c.l.b16 %v760
    %v922 = vunpack.c.h.b16 %v760
    %v923 = vunpack.c.l.b16 %v761
    %v924 = vunpack.c.l.b16 %v762
    %v925 = vunpack.c.h.b16 %v762
    %v926 = vunpack.c.l.b16 %v763
    %v927 = vunpack.c.l.b16 %v764
    %v928 = vunpack.c.h.b16 %v764
    %v929 = vunpack.c.l.b16 %v765
    %v930 = vunpack.c.l.b16 %v766
    %v931 = vunpack.c.h.b16 %v766
    %v932 = vunpack.c.l.b16 %v767
    %v933 = vunpack.c.l.b16 %v768
    %v934 = vunpack.c.h.b16 %v768
    %v935 = vunpack.c.l.b16 %v769
    %v936 = vunpack.c.l.b16 %v770
    %v937 = vunpack.c.h.b16 %v770
    %v938 = vunpack.c.l.b16 %v771
    %v939 = vunpack.c.l.b16 %v772
    %v940 = vunpack.c.h.b16 %v772
    %v941 = vunpack.c.l.b16 %v773
    %v942 = vpack.c.b16 %v849, %v846
    %v943 = vpack.c.b16 %v850, %v847
    %v944 = vpack.c.b16 %v851, %v848
    %v945 = vpack.c.b16 %v855, %v852
    %v946 = vpack.c.b16 %v856, %v853
    %v947 = vpack.c.b16 %v857, %v854
    %v948 = vpack.c.b16 %v861, %v858
    %v949 = vpack.c.b16 %v862, %v859
    %v950 = vpack.c.b16 %v863, %v860
    %v951 = vpack.c.b16 %v867, %v864
    %v952 = vpack.c.b16 %v868, %v865
    %v953 = vpack.c.b16 %v869, %v866
    %v954 = vpack.c.b16 %v873, %v870
    %v955 = vpack.c.b16 %v874, %v871
    %v956 = vpack.c.b16 %v875, %v872
    %v957 = vpack.c.b16 %v879, %v876
    %v958 = vpack.c.b16 %v880, %v877
    %v959 = vpack.c.b16 %v881, %v878
    %v960 = vpack.c.b16 %v885, %v882
    %v961 = vpack.c.b16 %v886, %v883
    %v962 = vpack.c.b16 %v887, %v884
    %v963 = vpack.c.b16 %v891, %v888
    %v964 = vpack.c.b16 %v892, %v889
    %v965 = vpack.c.b16 %v893, %v890
    %v966 = vpack.c.b16 %v897, %v894
    %v967 = vpack.c.b16 %v898, %v895
    %v968 = vpack.c.b16 %v899, %v896
    %v969 = vpack.c.b16 %v903, %v900
    %v970 = vpack.c.b16 %v904, %v901
    %v971 = vpack.c.b16 %v905, %v902
    %v972 = vpack.c.b16 %v909, %v906
    %v973 = vpack.c.b16 %v910, %v907
    %v974 = vpack.c.b16 %v911, %v908
    %v975 = vpack.c.b16 %v915, %v912
    %v976 = vpack.c.b16 %v916, %v913
    %v977 = vpack.c.b16 %v917, %v914
    %v978 = vpack.c.b16 %v921, %v918
    %v979 = vpack.c.b16 %v922, %v919
    %v980 = vpack.c.b16 %v923, %v920
    %v981 = vpack.c.b16 %v927, %v924
    %v982 = vpack.c.b16 %v928, %v925
    %v983 = vpack.c.b16 %v929, %v926
    %v984 = vpack.c.b16 %v933, %v930
    %v985 = vpack.c.b16 %v934, %v931
    %v986 = vpack.c.b16 %v935, %v932
    %v987 = vpack.c.b16 %v939, %v936
    %v988 = vpack.c.b16 %v940, %v937
    %v989 = vpack.c.b16 %v941, %v938
    %1038 = vmatpush.bf16.msra.mxu0 %v963
    %1039 = vmatpush.bf16.msra.mxu0 %v960
    %1040 = vmatpush.bf16.msra.mxu0 %v957
    %1041 = vmatpush.bf16.msra.mxu0 %v954
    %1042 = vmatpush.bf16.msra.mxu0 %v951
    %1043 = vmatpush.bf16.msra.mxu0 %v948
    %1044 = vmatpush.bf16.msra.mxu0 %v945
    %1045 = vmatpush.bf16.msra.mxu0 %v942
    %1046 = vmatmul.bf16.gmra.mxu0 %v708
    %v1047 = vpop.f32.mrf.mxu0
    %v1048 = vadd.f32 %v776, %v1047
    %v1049 = vpop.f32.mrf.mxu0
    %1050 = vdwg.mxu0
    %1051 = vmatpush.bf16.msra.mxu0 %v987
    %1052 = vmatpush.bf16.msra.mxu0 %v984
    %1053 = vmatpush.bf16.msra.mxu0 %v981
    %1054 = vmatpush.bf16.msra.mxu0 %v978
    %1055 = vmatpush.bf16.msra.mxu0 %v975
    %1056 = vmatpush.bf16.msra.mxu0 %v972
    %1057 = vmatpush.bf16.msra.mxu0 %v969
    %1058 = vmatpush.bf16.msra.mxu0 %v966
    %1059 = vmatmul.bf16.gmra.mxu0 %v709
    %v1060 = vpop.f32.mrf.mxu0
    %v1061 = vadd.f32 %v1048, %v1060
    %v1062 = vpop.f32.mrf.mxu0
    %1063 = vdwg.mxu0
    %1064 = vmatpush.bf16.msra.mxu0 %v964
    %1065 = vmatpush.bf16.msra.mxu0 %v961
    %1066 = vmatpush.bf16.msra.mxu0 %v958
    %1067 = vmatpush.bf16.msra.mxu0 %v955
    %1068 = vmatpush.bf16.msra.mxu0 %v952
    %1069 = vmatpush.bf16.msra.mxu0 %v949
    %1070 = vmatpush.bf16.msra.mxu0 %v946
    %1071 = vmatpush.bf16.msra.mxu0 %v943
    %1072 = vmatmul.bf16.gmra.mxu0 %v708
    %v1073 = vpop.f32.mrf.mxu0
    %v1074 = vadd.f32 %v777, %v1073
    %v1075 = vpop.f32.mrf.mxu0
    %1076 = vdwg.mxu0
    %1077 = vmatpush.bf16.msra.mxu0 %v988
    %1078 = vmatpush.bf16.msra.mxu0 %v985
    %1079 = vmatpush.bf16.msra.mxu0 %v982
    %1080 = vmatpush.bf16.msra.mxu0 %v979
    %1081 = vmatpush.bf16.msra.mxu0 %v976
    %1082 = vmatpush.bf16.msra.mxu0 %v973
    %1083 = vmatpush.bf16.msra.mxu0 %v970
    %1084 = vmatpush.bf16.msra.mxu0 %v967
    %1085 = vmatmul.bf16.gmra.mxu0 %v709
    %v1086 = vpop.f32.mrf.mxu0
    %v1087 = vadd.f32 %v1074, %v1086
    %v1088 = vpop.f32.mrf.mxu0
    %1089 = vdwg.mxu0
    %1090 = vmatpush.bf16.msra.mxu0 %v965
    %1091 = vmatpush.bf16.msra.mxu0 %v962
    %1092 = vmatpush.bf16.msra.mxu0 %v959
    %1093 = vmatpush.bf16.msra.mxu0 %v956
    %1094 = vmatpush.bf16.msra.mxu0 %v953
    %1095 = vmatpush.bf16.msra.mxu0 %v950
    %1096 = vmatpush.bf16.msra.mxu0 %v947
    %1097 = vmatpush.bf16.msra.mxu0 %v944
    %1098 = vmatmul.bf16.gmra.mxu0 %v708
    %v1099 = vpop.f32.mrf.mxu0
    %v1100 = vadd.f32 %v778, %v1099
    %v1101 = vpop.f32.mrf.mxu0
    %1102 = vdwg.mxu0
    %1103 = vmatpush.bf16.msra.mxu0 %v989
    %1104 = vmatpush.bf16.msra.mxu0 %v986
    %1105 = vmatpush.bf16.msra.mxu0 %v983
    %1106 = vmatpush.bf16.msra.mxu0 %v980
    %1107 = vmatpush.bf16.msra.mxu0 %v977
    %1108 = vmatpush.bf16.msra.mxu0 %v974
    %1109 = vmatpush.bf16.msra.mxu0 %v971
    %1110 = vmatpush.bf16.msra.mxu0 %v968
    %1111 = vmatmul.bf16.gmra.mxu0 %v709
    %v1112 = vpop.f32.mrf.mxu0
    %v1113 = vadd.f32 %v1100, %v1112
    %v1114 = vpop.f32.mrf.mxu0
    %1115 = vdwg.mxu0
    %v1116 = vxor.u32 %v1061, 2147483648
    %v1117 = vxor.u32 %v1087, 2147483648
    %v1118 = vxor.u32 %v1113, 2147483648
    %v1119 = vmul.f32 %v1116, 1.442695
    %v1120 = vpow.pop %v1119
    %v1121 = vmul.f32 %v1117, 1.442695
    %v1122 = vpow.pop %v1121
    %v1123 = vmul.f32 %v1118, 1.442695
    %v1124 = vpow.pop %v1123
    %v1125 = vadd.f32 %v1120, 1.0
    %v1126 = vadd.f32 %v1122, 1.0
    %v1127 = vadd.f32 %v1124, 1.0
    %v1128 = vrcp.pop %v1125
    %v1129 = vmul.f32 %v1125, %v1128
    %v1130 = vsub.f32 1.0, %v1129
    %v1131 = vmul.f32 %v1128, %v1130
    %v1132 = vadd.f32 %v1128, %v1131
    %vm1133 = vweird.f32 %v1125
    %vm1134 = vweird.f32 %v1128
    %vm1135 = vmor %vm1133, %vm1134
    %v1136 = vsel %vm1135, %v1128, %v1132
    %v1137 = vand.u32 2147483647, %v1125
    %vm1138 = vcmp.eq.f32.partialorder %v1137, 8.507059e+37
    %v1139 = vand.u32 %v1125, 2147483648
    %v1140 = vor.u32 1.1754944e-38, %v1139
    %v1141 = vsel %vm1138, %v1140, %v1136
    %v1142 = vmul.f32 1.0, %v1141
    %v1143 = vrcp.pop %v1126
    %v1144 = vmul.f32 %v1126, %v1143
    %v1145 = vsub.f32 1.0, %v1144
    %v1146 = vmul.f32 %v1143, %v1145
    %v1147 = vadd.f32 %v1143, %v1146
    %vm1148 = vweird.f32 %v1126
    %vm1149 = vweird.f32 %v1143
    %vm1150 = vmor %vm1148, %vm1149
    %v1151 = vsel %vm1150, %v1143, %v1147
    %v1152 = vand.u32 2147483647, %v1126
    %vm1153 = vcmp.eq.f32.partialorder %v1152, 8.507059e+37
    %v1154 = vand.u32 %v1126, 2147483648
    %v1155 = vor.u32 1.1754944e-38, %v1154
    %v1156 = vsel %vm1153, %v1155, %v1151
    %v1157 = vmul.f32 1.0, %v1156
    %v1158 = vrcp.pop %v1127
    %v1159 = vmul.f32 %v1127, %v1158
    %v1160 = vsub.f32 1.0, %v1159
    %v1161 = vmul.f32 %v1158, %v1160
    %v1162 = vadd.f32 %v1158, %v1161
    %vm1163 = vweird.f32 %v1127
    %vm1164 = vweird.f32 %v1158
    %vm1165 = vmor %vm1163, %vm1164
    %v1166 = vsel %vm1165, %v1158, %v1162
    %v1167 = vand.u32 2147483647, %v1127
    %vm1168 = vcmp.eq.f32.partialorder %v1167, 8.507059e+37
    %v1169 = vand.u32 %v1127, 2147483648
    %v1170 = vor.u32 1.1754944e-38, %v1169
    %v1171 = vsel %vm1168, %v1170, %v1166
    %v1172 = vmul.f32 1.0, %v1171
    %v1173 = vmul.f32 %v1061, %v1142
    %v1174 = vmul.f32 %v1087, %v1157
    %v1175 = vmul.f32 %v1113, %v1172
    %v1176 = vpack.c.bf16 %v1173, %v1173
    %v1177 = vpack.c.bf16 %v1174, %v1174
    %v1178 = vpack.c.bf16 %v1175, %v1175
    %v1179 = vld [vmem:[#allocation7] sm:$0xff]
    %v1180 = vld [vmem:[#allocation7 + $0x8] sm:$0xf]
    %v1181 = vld [vmem:[#allocation7 + $0xc] sm:$0xff]
    %v1182 = vld [vmem:[#allocation7 + $0x14] sm:$0xf]
    %v1183 = vld [vmem:[#allocation7 + $0x18] sm:$0xff]
    %v1184 = vld [vmem:[#allocation7 + $0x20] sm:$0xf]
    %v1185 = vld [vmem:[#allocation7 + $0x24] sm:$0xff]
    %v1186 = vld [vmem:[#allocation7 + $0x2c] sm:$0xf]
    %v1187 = vld [vmem:[#allocation7 + $0x30] sm:$0xff]
    %v1188 = vld [vmem:[#allocation7 + $0x38] sm:$0xf]
    %v1189 = vld [vmem:[#allocation7 + $0x3c] sm:$0xff]
    %v1190 = vld [vmem:[#allocation7 + $0x44] sm:$0xf]
    %v1191 = vld [vmem:[#allocation7 + $0x48] sm:$0xff]
    %v1192 = vld [vmem:[#allocation7 + $0x50] sm:$0xf]
    %v1193 = vld [vmem:[#allocation7 + $0x54] sm:$0xff]
    %v1194 = vld [vmem:[#allocation7 + $0x5c] sm:$0xf]
    %v1195 = vld [vmem:[#allocation7 + $0x60] sm:$0xff]
    %v1196 = vld [vmem:[#allocation7 + $0x68] sm:$0xf]
    %v1197 = vld [vmem:[#allocation7 + $0x6c] sm:$0xff]
    %v1198 = vld [vmem:[#allocation7 + $0x74] sm:$0xf]
    %v1199 = vld [vmem:[#allocation7 + $0x78] sm:$0xff]
    %v1200 = vld [vmem:[#allocation7 + $0x80] sm:$0xf]
    %v1201 = vld [vmem:[#allocation7 + $0x84] sm:$0xff]
    %v1202 = vld [vmem:[#allocation7 + $0x8c] sm:$0xf]
    %v1203 = vld [vmem:[#allocation7 + $0x90] sm:$0xff]
    %v1204 = vld [vmem:[#allocation7 + $0x98] sm:$0xf]
    %v1205 = vld [vmem:[#allocation7 + $0x9c] sm:$0xff]
    %v1206 = vld [vmem:[#allocation7 + $0xa4] sm:$0xf]
    %v1207 = vld [vmem:[#allocation7 + $0xa8] sm:$0xff]
    %v1208 = vld [vmem:[#allocation7 + $0xb0] sm:$0xf]
    %v1209 = vld [vmem:[#allocation7 + $0xb4] sm:$0xff]
    %v1210 = vld [vmem:[#allocation7 + $0xbc] sm:$0xf]
    %v1211 = vld [vmem:[#allocation7 + $0xc0] sm:$0xff]
    %v1212 = vld [vmem:[#allocation7 + $0xc8] sm:$0xf]
    %v1213 = vld [vmem:[#allocation7 + $0xcc] sm:$0xff]
    %v1214 = vld [vmem:[#allocation7 + $0xd4] sm:$0xf]
    %v1215 = vld [vmem:[#allocation7 + $0xd8] sm:$0xff]
    %v1216 = vld [vmem:[#allocation7 + $0xe0] sm:$0xf]
    %v1217 = vld [vmem:[#allocation7 + $0xe4] sm:$0xff]
    %v1218 = vld [vmem:[#allocation7 + $0xec] sm:$0xf]
    %v1219 = vld [vmem:[#allocation7 + $0xf0] sm:$0xff]
    %v1220 = vld [vmem:[#allocation7 + $0xf8] sm:$0xf]
    %v1221 = vld [vmem:[#allocation7 + $0xfc] sm:$0xff]
    %v1222 = vld [vmem:[#allocation7 + $0x104] sm:$0xf]
    %v1223 = vld [vmem:[#allocation7 + $0x108] sm:$0xff]
    %v1224 = vld [vmem:[#allocation7 + $0x110] sm:$0xf]
    %v1225 = vld [vmem:[#allocation7 + $0x114] sm:$0xff]
    %v1226 = vld [vmem:[#allocation7 + $0x11c] sm:$0xf]
    %v1227 = vld [vmem:[#allocation7 + $0x120] sm:$0xff]
    %v1228 = vld [vmem:[#allocation7 + $0x128] sm:$0xf]
    %v1229 = vld [vmem:[#allocation7 + $0x12c] sm:$0xff]
    %v1230 = vld [vmem:[#allocation7 + $0x134] sm:$0xf]
    %v1231 = vld [vmem:[#allocation7 + $0x138] sm:$0xff]
    %v1232 = vld [vmem:[#allocation7 + $0x140] sm:$0xf]
    %v1233 = vld [vmem:[#allocation7 + $0x144] sm:$0xff]
    %v1234 = vld [vmem:[#allocation7 + $0x14c] sm:$0xf]
    %v1235 = vld [vmem:[#allocation7 + $0x150] sm:$0xff]
    %v1236 = vld [vmem:[#allocation7 + $0x158] sm:$0xf]
    %v1237 = vld [vmem:[#allocation7 + $0x15c] sm:$0xff]
    %v1238 = vld [vmem:[#allocation7 + $0x164] sm:$0xf]
    %v1239 = vld [vmem:[#allocation7 + $0x168] sm:$0xff]
    %v1240 = vld [vmem:[#allocation7 + $0x170] sm:$0xf]
    %v1241 = vld [vmem:[#allocation7 + $0x174] sm:$0xff]
    %v1242 = vld [vmem:[#allocation7 + $0x17c] sm:$0xf]
    %v1243 = vld [vmem:[#allocation7 + $0x180] sm:$0xff]
    %v1244 = vld [vmem:[#allocation7 + $0x188] sm:$0xf]
    %v1245 = vld [vmem:[#allocation7 + $0x18c] sm:$0xff]
    %v1246 = vld [vmem:[#allocation7 + $0x194] sm:$0xf]
    %v1247 = vld [vmem:[#allocation7 + $0x198] sm:$0xff]
    %v1248 = vld [vmem:[#allocation7 + $0x1a0] sm:$0xf]
    %v1249 = vld [vmem:[#allocation7 + $0x1a4] sm:$0xff]
    %v1250 = vld [vmem:[#allocation7 + $0x1ac] sm:$0xf]
    %v1251 = vld [vmem:[#allocation7 + $0x1b0] sm:$0xff]
    %v1252 = vld [vmem:[#allocation7 + $0x1b8] sm:$0xf]
    %v1253 = vld [vmem:[#allocation7 + $0x1bc] sm:$0xff]
    %v1254 = vld [vmem:[#allocation7 + $0x1c4] sm:$0xf]
    %v1255 = vld [vmem:[#allocation7 + $0x1c8] sm:$0xff]
    %v1256 = vld [vmem:[#allocation7 + $0x1d0] sm:$0xf]
    %v1257 = vld [vmem:[#allocation7 + $0x1d4] sm:$0xff]
    %v1258 = vld [vmem:[#allocation7 + $0x1dc] sm:$0xf]
    %v1259 = vld [vmem:[#allocation7 + $0x1e0] sm:$0xff]
    %v1260 = vld [vmem:[#allocation7 + $0x1e8] sm:$0xf]
    %v1261 = vld [vmem:[#allocation7 + $0x1ec] sm:$0xff]
    %v1262 = vld [vmem:[#allocation7 + $0x1f4] sm:$0xf]
    %v1263 = vld [vmem:[#allocation7 + $0x1f8] sm:$0xff]
    %v1264 = vld [vmem:[#allocation7 + $0x200] sm:$0xf]
    %v1265 = vld [vmem:[#allocation7 + $0x204] sm:$0xff]
    %v1266 = vld [vmem:[#allocation7 + $0x20c] sm:$0xf]
    %v1267 = vld [vmem:[#allocation7 + $0x210] sm:$0xff]
    %v1268 = vld [vmem:[#allocation7 + $0x218] sm:$0xf]
    %v1269 = vld [vmem:[#allocation7 + $0x21c] sm:$0xff]
    %v1270 = vld [vmem:[#allocation7 + $0x224] sm:$0xf]
    %v1271 = vld [vmem:[#allocation7 + $0x228] sm:$0xff]
    %v1272 = vld [vmem:[#allocation7 + $0x230] sm:$0xf]
    %v1273 = vld [vmem:[#allocation7 + $0x234] sm:$0xff]
    %v1274 = vld [vmem:[#allocation7 + $0x23c] sm:$0xf]
    %v1275 = vld [vmem:[%s5] sm:$0x7]
    %v1277 = vperm.slane %v1275, 0
    %v1278 = vperm.slane %v1275, 1
    %v1279 = vperm.slane %v1275, 2
    %v1379 = vunpack.c.l.b16 %v1179
    %v1380 = vunpack.c.h.b16 %v1179
    %v1381 = vunpack.c.l.b16 %v1180
    %v1382 = vunpack.c.l.b16 %v1181
    %v1383 = vunpack.c.h.b16 %v1181
    %v1384 = vunpack.c.l.b16 %v1182
    %v1385 = vunpack.c.l.b16 %v1183
    %v1386 = vunpack.c.h.b16 %v1183
    %v1387 = vunpack.c.l.b16 %v1184
    %v1388 = vunpack.c.l.b16 %v1185
    %v1389 = vunpack.c.h.b16 %v1185
    %v1390 = vunpack.c.l.b16 %v1186
    %v1391 = vunpack.c.l.b16 %v1187
    %v1392 = vunpack.c.h.b16 %v1187
    %v1393 = vunpack.c.l.b16 %v1188
    %v1394 = vunpack.c.l.b16 %v1189
    %v1395 = vunpack.c.h.b16 %v1189
    %v1396 = vunpack.c.l.b16 %v1190
    %v1397 = vunpack.c.l.b16 %v1191
    %v1398 = vunpack.c.h.b16 %v1191
    %v1399 = vunpack.c.l.b16 %v1192
    %v1400 = vunpack.c.l.b16 %v1193
    %v1401 = vunpack.c.h.b16 %v1193
    %v1402 = vunpack.c.l.b16 %v1194
    %v1403 = vunpack.c.l.b16 %v1195
    %v1404 = vunpack.c.h.b16 %v1195
    %v1405 = vunpack.c.l.b16 %v1196
    %v1406 = vunpack.c.l.b16 %v1197
    %v1407 = vunpack.c.h.b16 %v1197
    %v1408 = vunpack.c.l.b16 %v1198
    %v1409 = vunpack.c.l.b16 %v1199
    %v1410 = vunpack.c.h.b16 %v1199
    %v1411 = vunpack.c.l.b16 %v1200
    %v1412 = vunpack.c.l.b16 %v1201
    %v1413 = vunpack.c.h.b16 %v1201
    %v1414 = vunpack.c.l.b16 %v1202
    %v1415 = vunpack.c.l.b16 %v1203
    %v1416 = vunpack.c.h.b16 %v1203
    %v1417 = vunpack.c.l.b16 %v1204
    %v1418 = vunpack.c.l.b16 %v1205
    %v1419 = vunpack.c.h.b16 %v1205
    %v1420 = vunpack.c.l.b16 %v1206
    %v1421 = vunpack.c.l.b16 %v1207
    %v1422 = vunpack.c.h.b16 %v1207
    %v1423 = vunpack.c.l.b16 %v1208
    %v1424 = vunpack.c.l.b16 %v1209
    %v1425 = vunpack.c.h.b16 %v1209
    %v1426 = vunpack.c.l.b16 %v1210
    %v1427 = vunpack.c.l.b16 %v1211
    %v1428 = vunpack.c.h.b16 %v1211
    %v1429 = vunpack.c.l.b16 %v1212
    %v1430 = vunpack.c.l.b16 %v1213
    %v1431 = vunpack.c.h.b16 %v1213
    %v1432 = vunpack.c.l.b16 %v1214
    %v1433 = vunpack.c.l.b16 %v1215
    %v1434 = vunpack.c.h.b16 %v1215
    %v1435 = vunpack.c.l.b16 %v1216
    %v1436 = vunpack.c.l.b16 %v1217
    %v1437 = vunpack.c.h.b16 %v1217
    %v1438 = vunpack.c.l.b16 %v1218
    %v1439 = vunpack.c.l.b16 %v1219
    %v1440 = vunpack.c.h.b16 %v1219
    %v1441 = vunpack.c.l.b16 %v1220
    %v1442 = vunpack.c.l.b16 %v1221
    %v1443 = vunpack.c.h.b16 %v1221
    %v1444 = vunpack.c.l.b16 %v1222
    %v1445 = vunpack.c.l.b16 %v1223
    %v1446 = vunpack.c.h.b16 %v1223
    %v1447 = vunpack.c.l.b16 %v1224
    %v1448 = vunpack.c.l.b16 %v1225
    %v1449 = vunpack.c.h.b16 %v1225
    %v1450 = vunpack.c.l.b16 %v1226
    %v1451 = vunpack.c.l.b16 %v1227
    %v1452 = vunpack.c.h.b16 %v1227
    %v1453 = vunpack.c.l.b16 %v1228
    %v1454 = vunpack.c.l.b16 %v1229
    %v1455 = vunpack.c.h.b16 %v1229
    %v1456 = vunpack.c.l.b16 %v1230
    %v1457 = vunpack.c.l.b16 %v1231
    %v1458 = vunpack.c.h.b16 %v1231
    %v1459 = vunpack.c.l.b16 %v1232
    %v1460 = vunpack.c.l.b16 %v1233
    %v1461 = vunpack.c.h.b16 %v1233
    %v1462 = vunpack.c.l.b16 %v1234
    %v1463 = vunpack.c.l.b16 %v1235
    %v1464 = vunpack.c.h.b16 %v1235
    %v1465 = vunpack.c.l.b16 %v1236
    %v1466 = vunpack.c.l.b16 %v1237
    %v1467 = vunpack.c.h.b16 %v1237
    %v1468 = vunpack.c.l.b16 %v1238
    %v1469 = vunpack.c.l.b16 %v1239
    %v1470 = vunpack.c.h.b16 %v1239
    %v1471 = vunpack.c.l.b16 %v1240
    %v1472 = vunpack.c.l.b16 %v1241
    %v1473 = vunpack.c.h.b16 %v1241
    %v1474 = vunpack.c.l.b16 %v1242
    %v1475 = vunpack.c.l.b16 %v1243
    %v1476 = vunpack.c.h.b16 %v1243
    %v1477 = vunpack.c.l.b16 %v1244
    %v1478 = vunpack.c.l.b16 %v1245
    %v1479 = vunpack.c.h.b16 %v1245
    %v1480 = vunpack.c.l.b16 %v1246
    %v1481 = vunpack.c.l.b16 %v1247
    %v1482 = vunpack.c.h.b16 %v1247
    %v1483 = vunpack.c.l.b16 %v1248
    %v1484 = vunpack.c.l.b16 %v1249
    %v1485 = vunpack.c.h.b16 %v1249
    %v1486 = vunpack.c.l.b16 %v1250
    %v1487 = vunpack.c.l.b16 %v1251
    %v1488 = vunpack.c.h.b16 %v1251
    %v1489 = vunpack.c.l.b16 %v1252
    %v1490 = vunpack.c.l.b16 %v1253
    %v1491 = vunpack.c.h.b16 %v1253
    %v1492 = vunpack.c.l.b16 %v1254
    %v1493 = vunpack.c.l.b16 %v1255
    %v1494 = vunpack.c.h.b16 %v1255
    %v1495 = vunpack.c.l.b16 %v1256
    %v1496 = vunpack.c.l.b16 %v1257
    %v1497 = vunpack.c.h.b16 %v1257
    %v1498 = vunpack.c.l.b16 %v1258
    %v1499 = vunpack.c.l.b16 %v1259
    %v1500 = vunpack.c.h.b16 %v1259
    %v1501 = vunpack.c.l.b16 %v1260
    %v1502 = vunpack.c.l.b16 %v1261
    %v1503 = vunpack.c.h.b16 %v1261
    %v1504 = vunpack.c.l.b16 %v1262
    %v1505 = vunpack.c.l.b16 %v1263
    %v1506 = vunpack.c.h.b16 %v1263
    %v1507 = vunpack.c.l.b16 %v1264
    %v1508 = vunpack.c.l.b16 %v1265
    %v1509 = vunpack.c.h.b16 %v1265
    %v1510 = vunpack.c.l.b16 %v1266
    %v1511 = vunpack.c.l.b16 %v1267
    %v1512 = vunpack.c.h.b16 %v1267
    %v1513 = vunpack.c.l.b16 %v1268
    %v1514 = vunpack.c.l.b16 %v1269
    %v1515 = vunpack.c.h.b16 %v1269
    %v1516 = vunpack.c.l.b16 %v1270
    %v1517 = vunpack.c.l.b16 %v1271
    %v1518 = vunpack.c.h.b16 %v1271
    %v1519 = vunpack.c.l.b16 %v1272
    %v1520 = vunpack.c.l.b16 %v1273
    %v1521 = vunpack.c.h.b16 %v1273
    %v1522 = vunpack.c.l.b16 %v1274
    %v1523 = vpack.c.b16 %v1382, %v1379
    %v1524 = vpack.c.b16 %v1383, %v1380
    %v1525 = vpack.c.b16 %v1384, %v1381
    %v1526 = vpack.c.b16 %v1388, %v1385
    %v1527 = vpack.c.b16 %v1389, %v1386
    %v1528 = vpack.c.b16 %v1390, %v1387
    %v1529 = vpack.c.b16 %v1394, %v1391
    %v1530 = vpack.c.b16 %v1395, %v1392
    %v1531 = vpack.c.b16 %v1396, %v1393
    %v1532 = vpack.c.b16 %v1400, %v1397
    %v1533 = vpack.c.b16 %v1401, %v1398
    %v1534 = vpack.c.b16 %v1402, %v1399
    %v1535 = vpack.c.b16 %v1406, %v1403
    %v1536 = vpack.c.b16 %v1407, %v1404
    %v1537 = vpack.c.b16 %v1408, %v1405
    %v1538 = vpack.c.b16 %v1412, %v1409
    %v1539 = vpack.c.b16 %v1413, %v1410
    %v1540 = vpack.c.b16 %v1414, %v1411
    %v1541 = vpack.c.b16 %v1418, %v1415
    %v1542 = vpack.c.b16 %v1419, %v1416
    %v1543 = vpack.c.b16 %v1420, %v1417
    %v1544 = vpack.c.b16 %v1424, %v1421
    %v1545 = vpack.c.b16 %v1425, %v1422
    %v1546 = vpack.c.b16 %v1426, %v1423
    %v1547 = vpack.c.b16 %v1430, %v1427
    %v1548 = vpack.c.b16 %v1431, %v1428
    %v1549 = vpack.c.b16 %v1432, %v1429
    %v1550 = vpack.c.b16 %v1436, %v1433
    %v1551 = vpack.c.b16 %v1437, %v1434
    %v1552 = vpack.c.b16 %v1438, %v1435
    %v1553 = vpack.c.b16 %v1442, %v1439
    %v1554 = vpack.c.b16 %v1443, %v1440
    %v1555 = vpack.c.b16 %v1444, %v1441
    %v1556 = vpack.c.b16 %v1448, %v1445
    %v1557 = vpack.c.b16 %v1449, %v1446
    %v1558 = vpack.c.b16 %v1450, %v1447
    %v1559 = vpack.c.b16 %v1454, %v1451
    %v1560 = vpack.c.b16 %v1455, %v1452
    %v1561 = vpack.c.b16 %v1456, %v1453
    %v1562 = vpack.c.b16 %v1460, %v1457
    %v1563 = vpack.c.b16 %v1461, %v1458
    %v1564 = vpack.c.b16 %v1462, %v1459
    %v1565 = vpack.c.b16 %v1466, %v1463
    %v1566 = vpack.c.b16 %v1467, %v1464
    %v1567 = vpack.c.b16 %v1468, %v1465
    %v1568 = vpack.c.b16 %v1472, %v1469
    %v1569 = vpack.c.b16 %v1473, %v1470
    %v1570 = vpack.c.b16 %v1474, %v1471
    %v1571 = vpack.c.b16 %v1478, %v1475
    %v1572 = vpack.c.b16 %v1479, %v1476
    %v1573 = vpack.c.b16 %v1480, %v1477
    %v1574 = vpack.c.b16 %v1484, %v1481
    %v1575 = vpack.c.b16 %v1485, %v1482
    %v1576 = vpack.c.b16 %v1486, %v1483
    %v1577 = vpack.c.b16 %v1490, %v1487
    %v1578 = vpack.c.b16 %v1491, %v1488
    %v1579 = vpack.c.b16 %v1492, %v1489
    %v1580 = vpack.c.b16 %v1496, %v1493
    %v1581 = vpack.c.b16 %v1497, %v1494
    %v1582 = vpack.c.b16 %v1498, %v1495
    %v1583 = vpack.c.b16 %v1502, %v1499
    %v1584 = vpack.c.b16 %v1503, %v1500
    %v1585 = vpack.c.b16 %v1504, %v1501
    %v1586 = vpack.c.b16 %v1508, %v1505
    %v1587 = vpack.c.b16 %v1509, %v1506
    %v1588 = vpack.c.b16 %v1510, %v1507
    %v1589 = vpack.c.b16 %v1514, %v1511
    %v1590 = vpack.c.b16 %v1515, %v1512
    %v1591 = vpack.c.b16 %v1516, %v1513
    %v1592 = vpack.c.b16 %v1520, %v1517
    %v1593 = vpack.c.b16 %v1521, %v1518
    %v1594 = vpack.c.b16 %v1522, %v1519
    %1667 = vmatpush.bf16.msra.mxu0 %v1544
    %1668 = vmatpush.bf16.msra.mxu0 %v1541
    %1669 = vmatpush.bf16.msra.mxu0 %v1538
    %1670 = vmatpush.bf16.msra.mxu0 %v1535
    %1671 = vmatpush.bf16.msra.mxu0 %v1532
    %1672 = vmatpush.bf16.msra.mxu0 %v1529
    %1673 = vmatpush.bf16.msra.mxu0 %v1526
    %1674 = vmatpush.bf16.msra.mxu0 %v1523
    %1675 = vmatmul.bf16.gmra.mxu0 %v1176
    %v1676 = vpop.f32.mrf.mxu0
    %v1677 = vadd.f32 %v1277, %v1676
    %v1678 = vpop.f32.mrf.mxu0
    %1679 = vdwg.mxu0
    %1680 = vmatpush.bf16.msra.mxu0 %v1568
    %1681 = vmatpush.bf16.msra.mxu0 %v1565
    %1682 = vmatpush.bf16.msra.mxu0 %v1562
    %1683 = vmatpush.bf16.msra.mxu0 %v1559
    %1684 = vmatpush.bf16.msra.mxu0 %v1556
    %1685 = vmatpush.bf16.msra.mxu0 %v1553
    %1686 = vmatpush.bf16.msra.mxu0 %v1550
    %1687 = vmatpush.bf16.msra.mxu0 %v1547
    %1688 = vmatmul.bf16.gmra.mxu0 %v1177
    %v1689 = vpop.f32.mrf.mxu0
    %v1690 = vadd.f32 %v1677, %v1689
    %v1691 = vpop.f32.mrf.mxu0
    %1692 = vdwg.mxu0
    %1693 = vmatpush.bf16.msra.mxu0 %v1592
    %1694 = vmatpush.bf16.msra.mxu0 %v1589
    %1695 = vmatpush.bf16.msra.mxu0 %v1586
    %1696 = vmatpush.bf16.msra.mxu0 %v1583
    %1697 = vmatpush.bf16.msra.mxu0 %v1580
    %1698 = vmatpush.bf16.msra.mxu0 %v1577
    %1699 = vmatpush.bf16.msra.mxu0 %v1574
    %1700 = vmatpush.bf16.msra.mxu0 %v1571
    %1701 = vmatmul.bf16.gmra.mxu0 %v1178
    %v1702 = vpop.f32.mrf.mxu0
    %v1703 = vadd.f32 %v1690, %v1702
    %v1704 = vpop.f32.mrf.mxu0
    %1705 = vdwg.mxu0
    %1706 = vmatpush.bf16.msra.mxu0 %v1545
    %1707 = vmatpush.bf16.msra.mxu0 %v1542
    %1708 = vmatpush.bf16.msra.mxu0 %v1539
    %1709 = vmatpush.bf16.msra.mxu0 %v1536
    %1710 = vmatpush.bf16.msra.mxu0 %v1533
    %1711 = vmatpush.bf16.msra.mxu0 %v1530
    %1712 = vmatpush.bf16.msra.mxu0 %v1527
    %1713 = vmatpush.bf16.msra.mxu0 %v1524
    %1714 = vmatmul.bf16.gmra.mxu0 %v1176
    %v1715 = vpop.f32.mrf.mxu0
    %v1716 = vadd.f32 %v1278, %v1715
    %v1717 = vpop.f32.mrf.mxu0
    %1718 = vdwg.mxu0
    %1719 = vmatpush.bf16.msra.mxu0 %v1569
    %1720 = vmatpush.bf16.msra.mxu0 %v1566
    %1721 = vmatpush.bf16.msra.mxu0 %v1563
    %1722 = vmatpush.bf16.msra.mxu0 %v1560
    %1723 = vmatpush.bf16.msra.mxu0 %v1557
    %1724 = vmatpush.bf16.msra.mxu0 %v1554
    %1725 = vmatpush.bf16.msra.mxu0 %v1551
    %1726 = vmatpush.bf16.msra.mxu0 %v1548
    %1727 = vmatmul.bf16.gmra.mxu0 %v1177
    %v1728 = vpop.f32.mrf.mxu0
    %v1729 = vadd.f32 %v1716, %v1728
    %v1730 = vpop.f32.mrf.mxu0
    %1731 = vdwg.mxu0
    %1732 = vmatpush.bf16.msra.mxu0 %v1593
    %1733 = vmatpush.bf16.msra.mxu0 %v1590
    %1734 = vmatpush.bf16.msra.mxu0 %v1587
    %1735 = vmatpush.bf16.msra.mxu0 %v1584
    %1736 = vmatpush.bf16.msra.mxu0 %v1581
    %1737 = vmatpush.bf16.msra.mxu0 %v1578
    %1738 = vmatpush.bf16.msra.mxu0 %v1575
    %1739 = vmatpush.bf16.msra.mxu0 %v1572
    %1740 = vmatmul.bf16.gmra.mxu0 %v1178
    %v1741 = vpop.f32.mrf.mxu0
    %v1742 = vadd.f32 %v1729, %v1741
    %v1743 = vpop.f32.mrf.mxu0
    %1744 = vdwg.mxu0
    %1745 = vmatpush.bf16.msra.mxu0 %v1546
    %1746 = vmatpush.bf16.msra.mxu0 %v1543
    %1747 = vmatpush.bf16.msra.mxu0 %v1540
    %1748 = vmatpush.bf16.msra.mxu0 %v1537
    %1749 = vmatpush.bf16.msra.mxu0 %v1534
    %1750 = vmatpush.bf16.msra.mxu0 %v1531
    %1751 = vmatpush.bf16.msra.mxu0 %v1528
    %1752 = vmatpush.bf16.msra.mxu0 %v1525
    %1753 = vmatmul.bf16.gmra.mxu0 %v1176
    %v1754 = vpop.f32.mrf.mxu0
    %v1755 = vadd.f32 %v1279, %v1754
    %v1756 = vpop.f32.mrf.mxu0
    %1757 = vdwg.mxu0
    %1758 = vmatpush.bf16.msra.mxu0 %v1570
    %1759 = vmatpush.bf16.msra.mxu0 %v1567
    %1760 = vmatpush.bf16.msra.mxu0 %v1564
    %1761 = vmatpush.bf16.msra.mxu0 %v1561
    %1762 = vmatpush.bf16.msra.mxu0 %v1558
    %1763 = vmatpush.bf16.msra.mxu0 %v1555
    %1764 = vmatpush.bf16.msra.mxu0 %v1552
    %1765 = vmatpush.bf16.msra.mxu0 %v1549
    %1766 = vmatmul.bf16.gmra.mxu0 %v1177
    %v1767 = vpop.f32.mrf.mxu0
    %v1768 = vadd.f32 %v1755, %v1767
    %v1769 = vpop.f32.mrf.mxu0
    %1770 = vdwg.mxu0
    %1771 = vmatpush.bf16.msra.mxu0 %v1594
    %1772 = vmatpush.bf16.msra.mxu0 %v1591
    %1773 = vmatpush.bf16.msra.mxu0 %v1588
    %1774 = vmatpush.bf16.msra.mxu0 %v1585
    %1775 = vmatpush.bf16.msra.mxu0 %v1582
    %1776 = vmatpush.bf16.msra.mxu0 %v1579
    %1777 = vmatpush.bf16.msra.mxu0 %v1576
    %1778 = vmatpush.bf16.msra.mxu0 %v1573
    %1779 = vmatmul.bf16.gmra.mxu0 %v1178
    %v1780 = vpop.f32.mrf.mxu0
    %v1781 = vadd.f32 %v1768, %v1780
    %v1782 = vpop.f32.mrf.mxu0
    %1783 = vdwg.mxu0
    %v1787 = vrot.slane %v1742, 6
    %v1788 = vrot.slane %v1781, 4
    %vm1789 = vcmask 1041408
    %v1790 = vsel %vm1789, %v1703, %v1787
    %vm1791 = vcmask 1043456
    %v1792 = vsel %vm1791, %v1790, %v1788
    %1794 = vst [vmem:[#allocation8] sm:$0x3f] %v1792
    // Predicated region
    $region38: #{tpu_custom_call.1} parent=1 // pred_check
      _
    $region39: #{tpu_custom_call.1} parent=1 // pred_check_branch
      %1796 = sbr.rel (0) target = $region41
    $region40: #{tpu_custom_call.1} parent=1 // pred_region
      %1798 = vsyncadd [#allocation4], 0
      %s1800 = sshll.u32 [#allocation8], 4
      %s1801 = int_to_ptr.vmem [resolvable:$true] %s1800
      %s1802 = sshll.u32 %s6, 4
      %s1803 = int_to_ptr.hbm [resolvable:$true] %s1802
      %1805 = dma.vmem_to_hbm [thread:$0]  %s1801, 96, %s1803, [#allocation4]
    $region41: #{tpu_custom_call.1} parent=1 // pred_fallthru
      _
    // Predicated region
    $region42: #{tpu_custom_call.1} parent=1 // pred_check
      _
    $region43: #{tpu_custom_call.1} parent=1 // pred_check_branch
      %1807 = sbr.rel (0) target = $region45
    $region44: #{tpu_custom_call.1} parent=1 // pred_region
      %1809 = dma.done [#allocation4], 96
    $region45: #{tpu_custom_call.1} parent=1 // pred_fallthru
      _
    %1810 = vsyncpa [#allocation3], 1
    %1811 = vsyncpa [#allocation6], 1
    %1812 = vsyncpa [#allocation4], 1

</llo_original>
